<compile_context>
chip_gen: v5e
topology: v5e:2x2
jax: 0.10.0
libtpu: 0.0.40
codegen_flags: <defaults>
</compile_context>

<pallas_src>
import functools

import numpy as np
import jax
import jax.numpy as jnp
from jax.experimental import pallas as pl
from jax.experimental.pallas import tpu as pltpu

_F32 = jnp.float32
_BF16 = jnp.bfloat16
_RMS_EPS = 1e-6  # LlamaConfig default rms_norm_eps

HIDDEN_DIM = 32
NUM_HEADS = 4
HEAD_DIM = HIDDEN_DIM // NUM_HEADS
INTER_DIM = 4 * HIDDEN_DIM
NUM_LLAMA_LAYERS = 2

# ---- packed bias/norm slab row indices (lane width = HIDDEN_DIM) -----------
_BR_GCN1B = 0
_BR_GCN2B = 1
_BR_BETAB = 2                               # wb1_b + wb2_b pre-summed
_BR_LN = 3                                  # ln1_l at 3+2l, ln2_l at 4+2l
_BR_FINAL = _BR_LN + 2 * NUM_LLAMA_LAYERS   # 7
_BR_CMB_B = _BR_FINAL + 1                   # 8
_BR_EC_B1 = _BR_FINAL + 2                   # 9
_BR_EC_W2 = _BR_FINAL + 3                   # 10  (ec_w2 stored as a ROW)
_BR_EC_B2 = _BR_FINAL + 4                   # 11
_BR_COS = _BR_FINAL + 5                     # 12  (cos: n rows, then sin: n rows)


def _wpack_layout(input_dim):
    """Row offsets of every (in, HIDDEN_DIM) weight inside the packed slab."""
    off, cur = {}, 0

    def add(name, rows):
        nonlocal cur
        off[name] = cur
        cur += rows

    add("gcn1", input_dim)
    add("gcn2", HIDDEN_DIM)
    add("wb1", HIDDEN_DIM)
    add("wb2", HIDDEN_DIM)
    add("rot", HIDDEN_DIM)                      # signed rotate-half permutation
    for l in range(NUM_LLAMA_LAYERS):
        add(f"wo{l}", HIDDEN_DIM)
        add(f"wd{l}", INTER_DIM)
    add("cmb", 2 * HIDDEN_DIM)
    add("ec1", 2 * HIDDEN_DIM)
    return off, cur


# ----------------------------------------------------------------------------
# Fused kernel
# ----------------------------------------------------------------------------
def _rms(x, w):
    var = jnp.mean(x * x, axis=-1, keepdims=True)
    return x * jax.lax.rsqrt(var + _RMS_EPS) * w


def fused_forward_kernel(a_hat_ref, x_ref, eidx_ref, wpack_ref, wqkv_ref,
                         wgu_ref, bpack_ref, edge_ref, node_ref):
    f32, bf16 = _F32, _BF16
    n, din = x_ref.shape
    e = eidx_ref.shape[0]
    H, NH, HD, I, L = HIDDEN_DIM, NUM_HEADS, HEAD_DIM, INTER_DIM, NUM_LLAMA_LAYERS
    layout, _ = _wpack_layout(din)

    def W(name, rows):                       # packed-weight row slice (bf16)
        o = layout[name]
        return wpack_ref[o:o + rows, :]

    def B(row):                              # packed-bias/norm single row (f32)
        return bpack_ref[row:row + 1, :]

    def mm(a, b):                            # bf16 MXU operands, f32 accumulate
        return jnp.dot(a.astype(bf16), b.astype(bf16), preferred_element_type=f32)

    # -------- GCN stack (dropout = identity in eval mode) --------------------
    a_hat = a_hat_ref[...]
    xw = mm(x_ref[...], W("gcn1", din))
    x_gnn = mm(a_hat, xw) + B(_BR_GCN1B)
    h_n_v = mm(a_hat, mm(x_gnn, W("gcn2", H))) + B(_BR_GCN2B)

    # -------- predict_missing_info: m_v = h_v + beta - h_N_v ------------------
    beta = jnp.tanh(mm(x_gnn, W("wb1", H)) + mm(h_n_v, W("wb2", H)) + B(_BR_BETAB))
    x_gnn = x_gnn + beta - h_n_v

    # -------- in-kernel generated constants ----------------------------------
    cos = bpack_ref[_BR_COS:_BR_COS + n, :]              # (n, H) RoPE tables
    sin = bpack_ref[_BR_COS + n:_BR_COS + 2 * n, :]
    rot = W("rot", H)                                    # (H, H) rotate-half (+/-1)
    scale = 1.0 / float(HD) ** 0.5

    lane = jax.lax.broadcasted_iota(jnp.int32, (1, H), 1)
    head_masks = [
        jnp.where((lane >= hh * HD) & (lane < (hh + 1) * HD), 1.0, 0.0).astype(f32)
        for hh in range(NH)]
    row_i = jax.lax.broadcasted_iota(jnp.int32, (n, n), 0)
    col_i = jax.lax.broadcasted_iota(jnp.int32, (n, n), 1)
    causal = jnp.where(col_i <= row_i, 0.0, -1e9).astype(f32)
    causal_stk = jnp.concatenate([causal] * NH, axis=0)  # (NH*n, n)

    # -------- Llama decoder layers (batch=None => one graph = one sequence) --
    h = x_gnn
    for l in range(L):
        # attention block
        xa = _rms(h, B(_BR_LN + 2 * l))
        qkv = mm(xa, wqkv_ref[l * H:(l + 1) * H, :])     # fused (n, 3H)
        q, k, v = qkv[:, :H], qkv[:, H:2 * H], qkv[:, 2 * H:3 * H]
        q = (q * cos + mm(q, rot) * sin) * scale
        k = k * cos + mm(k, rot) * sin

        # head-batched attention: heads stacked along sublanes
        q_stk = jnp.concatenate([q * m for m in head_masks], axis=0)   # (NH*n, H)
        scores = jax.lax.dot_general(
            q_stk.astype(bf16), k.astype(bf16), (((1,), (1,)), ((), ())),
            preferred_element_type=f32) + causal_stk                   # (NH*n, n)
        mx = jnp.max(scores, axis=-1, keepdims=True)
        p = jnp.exp(scores - mx)
        p = p / jnp.sum(p, axis=-1, keepdims=True)       # exact divide
        ctx_stk = mm(p, v)                                             # (NH*n, H)
        ctx = sum(ctx_stk[hh * n:(hh + 1) * n, :] * head_masks[hh]
                  for hh in range(NH))                                 # (n, H)
        h = h + mm(ctx, W(f"wo{l}", H))

        # SwiGLU MLP block (fused gate|up)
        xm = _rms(h, B(_BR_LN + 2 * l + 1))
        gu = mm(xm, wgu_ref[l * H:(l + 1) * H, :])       # (n, 2*INTER)
        g, u = gu[:, :I], gu[:, I:]
        h = h + mm(g * jax.nn.sigmoid(g) * u, W(f"wd{l}", I))

    x_llama = _rms(h, B(_BR_FINAL))

    # -------- combine: Linear(cat([x_gnn, x_llama], -1)), concat folded ------
    oc = layout["cmb"]
    node = (mm(x_gnn, wpack_ref[oc:oc + H, :])
            + mm(x_llama, wpack_ref[oc + H:oc + 2 * H, :]) + B(_BR_CMB_B))
    node_ref[...] = node

    # -------- edge classifier (one-hot gathers built in-kernel) --------------
    node_bf = node.astype(bf16)
    src = eidx_ref[:, 0:1]                               # (e, 1) int32
    dst = eidx_ref[:, 1:2]
    node_ids = jax.lax.broadcasted_iota(jnp.int32, (e, n), 1)
    src_oh = jnp.where(node_ids == src, 1.0, 0.0).astype(bf16)
    dst_oh = jnp.where(node_ids == dst, 1.0, 0.0).astype(bf16)
    src_emb = jnp.dot(src_oh, node_bf, preferred_element_type=f32)
    dst_emb = jnp.dot(dst_oh, node_bf, preferred_element_type=f32)

    oe = layout["ec1"]
    hid = jnp.maximum(
        mm(src_emb, wpack_ref[oe:oe + H, :])
        + mm(dst_emb, wpack_ref[oe + H:oe + 2 * H, :]) + B(_BR_EC_B1), 0.0)
    w2_row = B(_BR_EC_W2).astype(bf16)                   # (1, H)
    logit = jax.lax.dot_general(                         # lane-dense (1, e)
        w2_row, hid.astype(bf16), (((1,), (1,)), ((), ())),
        preferred_element_type=f32)
    edge_ref[...] = jax.nn.sigmoid(logit + bpack_ref[_BR_EC_B2:_BR_EC_B2 + 1, 0:1])


# ----------------------------------------------------------------------------
# Host-side glue: adjacency normalization, RoPE tables, parameter packing.
# ----------------------------------------------------------------------------
def gcn_normalized_adjacency(edge_index, num_nodes):
    src, dst = edge_index[0], edge_index[1]
    a = jnp.zeros((num_nodes, num_nodes), _F32).at[dst, src].add(1.0)
    a = a + jnp.eye(num_nodes, dtype=_F32)               # self loops
    deg = jnp.sum(a, axis=1)
    dinv = jax.lax.rsqrt(deg)
    return dinv[:, None] * a * dinv[None, :]


def rope_tables(seq_len, head_dim, theta=10000.0):
    inv_freq = 1.0 / (theta ** (np.arange(0, head_dim, 2, dtype=np.float32) / head_dim))
    t = np.arange(seq_len, dtype=np.float32)
    freqs = np.outer(t, inv_freq)
    emb = np.concatenate([freqs, freqs], axis=-1)        # (S, head_dim)
    return np.cos(emb), np.sin(emb)


def build_rotate_half_matrix():
    # rot(t) = t @ R  ==  per-head concat([-t[:, half:], t[:, :half]])
    half = HEAD_DIM // 2
    r = np.zeros((HIDDEN_DIM, HIDDEN_DIM), np.float32)
    for h in range(NUM_HEADS):
        b = h * HEAD_DIM
        for j in range(half):
            r[b + half + j, b + j] = -1.0
            r[b + j, b + half + j] = 1.0
    return r


def init_params(key, input_dim, hidden_dim, num_llama_layers=NUM_LLAMA_LAYERS):
    inter = hidden_dim * 4

    def nrm(k, shape, scale=0.05):
        return scale * jax.random.normal(k, shape, dtype=_F32)

    keys = iter(jax.random.split(key, 64))
    p = {
        "gcn1_w": nrm(next(keys), (input_dim, hidden_dim)),
        "gcn1_b": jnp.zeros((1, hidden_dim), _F32),
        "gcn2_w": nrm(next(keys), (hidden_dim, hidden_dim)),
        "gcn2_b": jnp.zeros((1, hidden_dim), _F32),
        "wb1_w": nrm(next(keys), (hidden_dim, hidden_dim)),
        "wb1_b": jnp.zeros((1, hidden_dim), _F32),
        "wb2_w": nrm(next(keys), (hidden_dim, hidden_dim)),
        "wb2_b": jnp.zeros((1, hidden_dim), _F32),
    }

    def stack(shape):
        return jnp.stack([nrm(next(keys), shape) for _ in range(num_llama_layers)])

    p["ln1"] = jnp.ones((num_llama_layers, 1, hidden_dim), _F32)
    p["wq"] = stack((hidden_dim, hidden_dim))
    p["wk"] = stack((hidden_dim, hidden_dim))
    p["wv"] = stack((hidden_dim, hidden_dim))
    p["wo"] = stack((hidden_dim, hidden_dim))
    p["ln2"] = jnp.ones((num_llama_layers, 1, hidden_dim), _F32)
    p["wg"] = stack((hidden_dim, inter))
    p["wu"] = stack((hidden_dim, inter))
    p["wd"] = stack((inter, hidden_dim))
    p["final_ln"] = jnp.ones((1, hidden_dim), _F32)
    p["combine_w"] = nrm(next(keys), (2 * hidden_dim, hidden_dim))
    p["combine_b"] = jnp.zeros((1, hidden_dim), _F32)
    p["ec_w1"] = nrm(next(keys), (2 * hidden_dim, hidden_dim))
    p["ec_b1"] = jnp.zeros((1, hidden_dim), _F32)
    p["ec_w2"] = nrm(next(keys), (hidden_dim, 1))
    p["ec_b2"] = jnp.zeros((1, 1), _F32)
    return p


# ----------------------------------------------------------------------------
# Forward pass (single pallas_call)
# ----------------------------------------------------------------------------
def etgn_forward(params, x, edge_index):
    n, din = x.shape
    e = edge_index.shape[1]
    H, L = HIDDEN_DIM, NUM_LLAMA_LAYERS

    a_hat = gcn_normalized_adjacency(edge_index, n).astype(_BF16)
    x_bf = x.astype(_BF16)
    eidx_t = edge_index.T.astype(jnp.int32)              # (E, 2)

    cos_hd, sin_hd = rope_tables(n, HEAD_DIM)
    cos = jnp.asarray(np.tile(cos_hd, (1, NUM_HEADS)), _F32)   # (n, H)
    sin = jnp.asarray(np.tile(sin_hd, (1, NUM_HEADS)), _F32)
    rot = jnp.asarray(build_rotate_half_matrix(), _F32)

    # -- packed weight slab (rows, H) bf16 --
    layout, total_rows = _wpack_layout(din)
    wrows = [params["gcn1_w"], params["gcn2_w"], params["wb1_w"], params["wb2_w"], rot]
    for l in range(L):
        wrows += [params["wo"][l], params["wd"][l]]
    wrows += [params["combine_w"], params["ec_w1"]]
    wpack = jnp.concatenate(wrows, axis=0).astype(_BF16)
    assert wpack.shape == (total_rows, H)

    # -- fused QKV and gate|up slabs --
    wqkv = jnp.concatenate(
        [jnp.concatenate([params["wq"][l], params["wk"][l], params["wv"][l]], axis=1)
         for l in range(L)], axis=0).astype(_BF16)       # (L*H, 3H)
    wgu = jnp.concatenate(
        [jnp.concatenate([params["wg"][l], params["wu"][l]], axis=1)
         for l in range(L)], axis=0).astype(_BF16)       # (L*H, 2*INTER)

    # -- packed bias / norm / RoPE slab (f32) --
    brows = [params["gcn1_b"], params["gcn2_b"], params["wb1_b"] + params["wb2_b"]]
    for l in range(L):
        brows += [params["ln1"][l], params["ln2"][l]]
    brows += [params["final_ln"], params["combine_b"], params["ec_b1"],
              params["ec_w2"].reshape(1, H),
              jnp.broadcast_to(params["ec_b2"], (1, H)),
              cos, sin]
    bpack = jnp.concatenate(brows, axis=0).astype(_F32)  # (12 + 2n, H)

    vmem = pl.BlockSpec(memory_space=pltpu.MemorySpace.VMEM)
    edge_row, node_emb = pl.pallas_call(
        fused_forward_kernel,
        out_shape=(jax.ShapeDtypeStruct((1, e), _F32),
                   jax.ShapeDtypeStruct((n, H), _F32)),
        in_specs=[vmem] * 7,
        out_specs=(vmem, vmem),
    )(a_hat, x_bf, eidx_t, wpack, wqkv, wgu, bpack)

    # The reference's outer `for _ in range(num_layers)` loop is collapsed:
    # with dropout off, both iterations produce identical `output` and `c`
    # stays the all-zero tensor threaded from iteration 1, so one pass is exact.
    edge_pred = edge_row.reshape(e, 1)                   # module's (E, 1) contract
    c_state = jnp.zeros_like(node_emb)
    return edge_pred, (node_emb, c_state)


# ----------------------------------------------------------------------------
if __name__ == "__main__":
    key = jax.random.PRNGKey(0)
    k_x, k_e, k_p = jax.random.split(key, 3)

    num_nodes, input_dim, num_edges = 16, 8, 24
    x = jax.random.normal(k_x, (num_nodes, input_dim), dtype=_F32)
    edge_index = jax.random.randint(k_e, (2, num_edges), 0, num_nodes, dtype=jnp.int32)

    params = init_params(k_p, input_dim, HIDDEN_DIM)

    fwd = jax.jit(functools.partial(etgn_forward, params))
    edge_pred, (h_state, c_state) = fwd(x, edge_index)
    jax.block_until_ready((edge_pred, h_state, c_state))

    assert edge_pred.shape == (num_edges, 1)
    assert h_state.shape == (num_nodes, HIDDEN_DIM)
    assert c_state.shape == (num_nodes, HIDDEN_DIM)
    print("KERNEL_OK")
</pallas_src>

<mosaic_0001>
module attributes {stable_mosaic.version = 11 : i64} {
  func.func @fused_forward_kernel(%arg0: memref<16x16xbf16, #tpu.memory_space<vmem>>, %arg1: memref<16x8xbf16, #tpu.memory_space<vmem>>, %arg2: memref<24x2xi32, #tpu.memory_space<vmem>>, %arg3: memref<584x32xbf16, #tpu.memory_space<vmem>>, %arg4: memref<64x96xbf16, #tpu.memory_space<vmem>>, %arg5: memref<64x256xbf16, #tpu.memory_space<vmem>>, %arg6: memref<44x32xf32, #tpu.memory_space<vmem>>, %arg7: memref<1x24xf32, #tpu.memory_space<vmem>>, %arg8: memref<16x32xf32, #tpu.memory_space<vmem>>) attributes {dimension_semantics = [], scalar_prefetch = 0 : i64, scratch_operands = 0 : i64, tpu.core_type = #tpu.core_type<tc>} {
    %c0 = arith.constant 0 : index
    %c0_0 = arith.constant 0 : index
    %0 = vector.load %arg0[%c0, %c0_0] : memref<16x16xbf16, #tpu.memory_space<vmem>>, vector<16x16xbf16>
    %c0_1 = arith.constant 0 : index
    %c0_2 = arith.constant 0 : index
    %1 = vector.load %arg1[%c0_1, %c0_2] : memref<16x8xbf16, #tpu.memory_space<vmem>>, vector<16x8xbf16>
    %c0_3 = arith.constant 0 : index
    %c0_4 = arith.constant 0 : index
    %2 = vector.load %arg3[%c0_3, %c0_4] : memref<584x32xbf16, #tpu.memory_space<vmem>>, vector<8x32xbf16>
    %cst = arith.constant dense<0.000000e+00> : vector<16x32xf32>
    %3 = tpu.matmul %1, %2, %cst {dimension_numbers = #tpu.dot_dimension_numbers<[1], [0], [0], [1], [0, 0, 1, 1], [], []>} : vector<16x8xbf16>, vector<8x32xbf16>, vector<16x32xf32> -> vector<16x32xf32>
    %4 = arith.truncf %3 : vector<16x32xf32> to vector<16x32xbf16>
    %cst_5 = arith.constant dense<0.000000e+00> : vector<16x32xf32>
    %5 = tpu.matmul %0, %4, %cst_5 {dimension_numbers = #tpu.dot_dimension_numbers<[1], [0], [0], [1], [0, 0, 1, 1], [], []>} : vector<16x16xbf16>, vector<16x32xbf16>, vector<16x32xf32> -> vector<16x32xf32>
    %c0_6 = arith.constant 0 : index
    %c0_7 = arith.constant 0 : index
    %6 = vector.load %arg6[%c0_6, %c0_7] : memref<44x32xf32, #tpu.memory_space<vmem>>, vector<1x32xf32>
    %7 = vector.broadcast %6 : vector<1x32xf32> to vector<16x32xf32>
    %8 = arith.addf %5, %7 : vector<16x32xf32>
    %c8 = arith.constant 8 : index
    %c0_8 = arith.constant 0 : index
    %9 = vector.load %arg3[%c8, %c0_8] : memref<584x32xbf16, #tpu.memory_space<vmem>>, vector<32x32xbf16>
    %10 = arith.truncf %8 : vector<16x32xf32> to vector<16x32xbf16>
    %cst_9 = arith.constant dense<0.000000e+00> : vector<16x32xf32>
    %11 = tpu.matmul %10, %9, %cst_9 {dimension_numbers = #tpu.dot_dimension_numbers<[1], [0], [0], [1], [0, 0, 1, 1], [], []>} : vector<16x32xbf16>, vector<32x32xbf16>, vector<16x32xf32> -> vector<16x32xf32>
    %12 = arith.truncf %11 : vector<16x32xf32> to vector<16x32xbf16>
    %cst_10 = arith.constant dense<0.000000e+00> : vector<16x32xf32>
    %13 = tpu.matmul %0, %12, %cst_10 {dimension_numbers = #tpu.dot_dimension_numbers<[1], [0], [0], [1], [0, 0, 1, 1], [], []>} : vector<16x16xbf16>, vector<16x32xbf16>, vector<16x32xf32> -> vector<16x32xf32>
    %c1 = arith.constant 1 : index
    %c0_11 = arith.constant 0 : index
    %14 = vector.load %arg6[%c1, %c0_11] : memref<44x32xf32, #tpu.memory_space<vmem>>, vector<1x32xf32>
    %15 = vector.broadcast %14 : vector<1x32xf32> to vector<16x32xf32>
    %16 = arith.addf %13, %15 : vector<16x32xf32>
    %c40 = arith.constant 40 : index
    %c0_12 = arith.constant 0 : index
    %17 = vector.load %arg3[%c40, %c0_12] : memref<584x32xbf16, #tpu.memory_space<vmem>>, vector<32x32xbf16>
    %18 = arith.truncf %8 : vector<16x32xf32> to vector<16x32xbf16>
    %cst_13 = arith.constant dense<0.000000e+00> : vector<16x32xf32>
    %19 = tpu.matmul %18, %17, %cst_13 {dimension_numbers = #tpu.dot_dimension_numbers<[1], [0], [0], [1], [0, 0, 1, 1], [], []>} : vector<16x32xbf16>, vector<32x32xbf16>, vector<16x32xf32> -> vector<16x32xf32>
    %c72 = arith.constant 72 : index
    %c0_14 = arith.constant 0 : index
    %20 = vector.load %arg3[%c72, %c0_14] : memref<584x32xbf16, #tpu.memory_space<vmem>>, vector<32x32xbf16>
    %21 = arith.truncf %16 : vector<16x32xf32> to vector<16x32xbf16>
    %cst_15 = arith.constant dense<0.000000e+00> : vector<16x32xf32>
    %22 = tpu.matmul %21, %20, %cst_15 {dimension_numbers = #tpu.dot_dimension_numbers<[1], [0], [0], [1], [0, 0, 1, 1], [], []>} : vector<16x32xbf16>, vector<32x32xbf16>, vector<16x32xf32> -> vector<16x32xf32>
    %23 = arith.addf %19, %22 : vector<16x32xf32>
    %c2 = arith.constant 2 : index
    %c0_16 = arith.constant 0 : index
    %24 = vector.load %arg6[%c2, %c0_16] : memref<44x32xf32, #tpu.memory_space<vmem>>, vector<1x32xf32>
    %25 = vector.broadcast %24 : vector<1x32xf32> to vector<16x32xf32>
    %26 = arith.addf %23, %25 : vector<16x32xf32>
    %27 = math.tanh %26 : vector<16x32xf32>
    %28 = arith.addf %8, %27 : vector<16x32xf32>
    %29 = arith.subf %28, %16 : vector<16x32xf32>
    %c12 = arith.constant 12 : index
    %c0_17 = arith.constant 0 : index
    %30 = vector.load %arg6[%c12, %c0_17] : memref<44x32xf32, #tpu.memory_space<vmem>>, vector<16x32xf32>
    %c28 = arith.constant 28 : index
    %c0_18 = arith.constant 0 : index
    %31 = vector.load %arg6[%c28, %c0_18] : memref<44x32xf32, #tpu.memory_space<vmem>>, vector<16x32xf32>
    %c104 = arith.constant 104 : index
    %c0_19 = arith.constant 0 : index
    %32 = vector.load %arg3[%c104, %c0_19] : memref<584x32xbf16, #tpu.memory_space<vmem>>, vector<32x32xbf16>
    %33 = tpu.iota {dimensions = array<i32: 1>} : vector<1x32xi32>
    %c0_i32 = arith.constant 0 : i32
    %34 = vector.broadcast %c0_i32 : i32 to vector<1x32xi32>
    %35 = arith.cmpi sge, %33, %34 : vector<1x32xi32>
    %c8_i32 = arith.constant 8 : i32
    %36 = vector.broadcast %c8_i32 : i32 to vector<1x32xi32>
    %37 = arith.cmpi slt, %33, %36 : vector<1x32xi32>
    %38 = arith.andi %35, %37 : vector<1x32xi1>
    %cst_20 = arith.constant 1.000000e+00 : f32
    %cst_21 = arith.constant 0.000000e+00 : f32
    %39 = vector.broadcast %cst_20 : f32 to vector<1x32xf32>
    %40 = vector.broadcast %cst_21 : f32 to vector<1x32xf32>
    %41 = arith.select %38, %39, %40 : vector<1x32xi1>, vector<1x32xf32>
    %c8_i32_22 = arith.constant 8 : i32
    %42 = vector.broadcast %c8_i32_22 : i32 to vector<1x32xi32>
    %43 = arith.cmpi sge, %33, %42 : vector<1x32xi32>
    %c16_i32 = arith.constant 16 : i32
    %44 = vector.broadcast %c16_i32 : i32 to vector<1x32xi32>
    %45 = arith.cmpi slt, %33, %44 : vector<1x32xi32>
    %46 = arith.andi %43, %45 : vector<1x32xi1>
    %cst_23 = arith.constant 1.000000e+00 : f32
    %cst_24 = arith.constant 0.000000e+00 : f32
    %47 = vector.broadcast %cst_23 : f32 to vector<1x32xf32>
    %48 = vector.broadcast %cst_24 : f32 to vector<1x32xf32>
    %49 = arith.select %46, %47, %48 : vector<1x32xi1>, vector<1x32xf32>
    %c16_i32_25 = arith.constant 16 : i32
    %50 = vector.broadcast %c16_i32_25 : i32 to vector<1x32xi32>
    %51 = arith.cmpi sge, %33, %50 : vector<1x32xi32>
    %c24_i32 = arith.constant 24 : i32
    %52 = vector.broadcast %c24_i32 : i32 to vector<1x32xi32>
    %53 = arith.cmpi slt, %33, %52 : vector<1x32xi32>
    %54 = arith.andi %51, %53 : vector<1x32xi1>
    %cst_26 = arith.constant 1.000000e+00 : f32
    %cst_27 = arith.constant 0.000000e+00 : f32
    %55 = vector.broadcast %cst_26 : f32 to vector<1x32xf32>
    %56 = vector.broadcast %cst_27 : f32 to vector<1x32xf32>
    %57 = arith.select %54, %55, %56 : vector<1x32xi1>, vector<1x32xf32>
    %c24_i32_28 = arith.constant 24 : i32
    %58 = vector.broadcast %c24_i32_28 : i32 to vector<1x32xi32>
    %59 = arith.cmpi sge, %33, %58 : vector<1x32xi32>
    %c32_i32 = arith.constant 32 : i32
    %60 = vector.broadcast %c32_i32 : i32 to vector<1x32xi32>
    %61 = arith.cmpi slt, %33, %60 : vector<1x32xi32>
    %62 = arith.andi %59, %61 : vector<1x32xi1>
    %cst_29 = arith.constant 1.000000e+00 : f32
    %cst_30 = arith.constant 0.000000e+00 : f32
    %63 = vector.broadcast %cst_29 : f32 to vector<1x32xf32>
    %64 = vector.broadcast %cst_30 : f32 to vector<1x32xf32>
    %65 = arith.select %62, %63, %64 : vector<1x32xi1>, vector<1x32xf32>
    %66 = tpu.iota {dimensions = array<i32: 0>} : vector<16x16xi32>
    %67 = tpu.iota {dimensions = array<i32: 1>} : vector<16x16xi32>
    %68 = arith.cmpi sle, %67, %66 : vector<16x16xi32>
    %cst_31 = arith.constant 0.000000e+00 : f32
    %cst_32 = arith.constant -1.000000e+09 : f32
    %69 = vector.broadcast %cst_31 : f32 to vector<16x16xf32>
    %70 = vector.broadcast %cst_32 : f32 to vector<16x16xf32>
    %71 = arith.select %68, %69, %70 : vector<16x16xi1>, vector<16x16xf32>
    %72 = tpu.concatenate %71, %71, %71, %71 in 0 : vector<16x16xf32>, vector<16x16xf32>, vector<16x16xf32>, vector<16x16xf32> -> vector<64x16xf32>
    %c3 = arith.constant 3 : index
    %c0_33 = arith.constant 0 : index
    %73 = vector.load %arg6[%c3, %c0_33] : memref<44x32xf32, #tpu.memory_space<vmem>>, vector<1x32xf32>
    %74 = arith.mulf %29, %29 : vector<16x32xf32>
    %cst_34 = arith.constant dense<0.000000e+00> : vector<16xf32>
    %75 = vector.multi_reduction <add>, %74, %cst_34 [1] : vector<16x32xf32> to vector<16xf32>
    %76 = vector.shape_cast %75 : vector<16xf32> to vector<16x1xf32>
    %cst_35 = arith.constant 3.200000e+01 : f32
    %77 = vector.broadcast %cst_35 : f32 to vector<16x1xf32>
    %78 = arith.divf %76, %77 : vector<16x1xf32>
    %cst_36 = arith.constant 9.99999997E-7 : f32
    %79 = vector.broadcast %cst_36 : f32 to vector<16x1xf32>
    %80 = arith.addf %78, %79 : vector<16x1xf32>
    %81 = math.rsqrt %80 : vector<16x1xf32>
    %82 = vector.broadcast %81 : vector<16x1xf32> to vector<16x32xf32>
    %83 = arith.mulf %29, %82 : vector<16x32xf32>
    %84 = vector.broadcast %73 : vector<1x32xf32> to vector<16x32xf32>
    %85 = arith.mulf %83, %84 : vector<16x32xf32>
    %c0_37 = arith.constant 0 : index
    %c0_38 = arith.constant 0 : index
    %86 = vector.load %arg4[%c0_37, %c0_38] : memref<64x96xbf16, #tpu.memory_space<vmem>>, vector<32x96xbf16>
    %87 = arith.truncf %85 : vector<16x32xf32> to vector<16x32xbf16>
    %cst_39 = arith.constant dense<0.000000e+00> : vector<16x96xf32>
    %88 = tpu.matmul %87, %86, %cst_39 {dimension_numbers = #tpu.dot_dimension_numbers<[1], [0], [0], [1], [0, 0, 1, 1], [], []>} : vector<16x32xbf16>, vector<32x96xbf16>, vector<16x96xf32> -> vector<16x96xf32>
    %89 = vector.extract_strided_slice %88 {offsets = [0, 0], sizes = [16, 32], strides = [1, 1]} : vector<16x96xf32> to vector<16x32xf32>
    %90 = vector.extract_strided_slice %88 {offsets = [0, 32], sizes = [16, 32], strides = [1, 1]} : vector<16x96xf32> to vector<16x32xf32>
    %91 = vector.extract_strided_slice %88 {offsets = [0, 64], sizes = [16, 32], strides = [1, 1]} : vector<16x96xf32> to vector<16x32xf32>
    %92 = arith.mulf %89, %30 : vector<16x32xf32>
    %93 = arith.truncf %89 : vector<16x32xf32> to vector<16x32xbf16>
    %cst_40 = arith.constant dense<0.000000e+00> : vector<16x32xf32>
    %94 = tpu.matmul %93, %32, %cst_40 {dimension_numbers = #tpu.dot_dimension_numbers<[1], [0], [0], [1], [0, 0, 1, 1], [], []>} : vector<16x32xbf16>, vector<32x32xbf16>, vector<16x32xf32> -> vector<16x32xf32>
    %95 = arith.mulf %94, %31 : vector<16x32xf32>
    %96 = arith.addf %92, %95 : vector<16x32xf32>
    %cst_41 = arith.constant 0.353553385 : f32
    %97 = vector.broadcast %cst_41 : f32 to vector<16x32xf32>
    %98 = arith.mulf %96, %97 : vector<16x32xf32>
    %99 = arith.mulf %90, %30 : vector<16x32xf32>
    %100 = arith.truncf %90 : vector<16x32xf32> to vector<16x32xbf16>
    %cst_42 = arith.constant dense<0.000000e+00> : vector<16x32xf32>
    %101 = tpu.matmul %100, %32, %cst_42 {dimension_numbers = #tpu.dot_dimension_numbers<[1], [0], [0], [1], [0, 0, 1, 1], [], []>} : vector<16x32xbf16>, vector<32x32xbf16>, vector<16x32xf32> -> vector<16x32xf32>
    %102 = arith.mulf %101, %31 : vector<16x32xf32>
    %103 = arith.addf %99, %102 : vector<16x32xf32>
    %104 = vector.broadcast %41 : vector<1x32xf32> to vector<16x32xf32>
    %105 = arith.mulf %98, %104 : vector<16x32xf32>
    %106 = vector.broadcast %49 : vector<1x32xf32> to vector<16x32xf32>
    %107 = arith.mulf %98, %106 : vector<16x32xf32>
    %108 = vector.broadcast %57 : vector<1x32xf32> to vector<16x32xf32>
    %109 = arith.mulf %98, %108 : vector<16x32xf32>
    %110 = vector.broadcast %65 : vector<1x32xf32> to vector<16x32xf32>
    %111 = arith.mulf %98, %110 : vector<16x32xf32>
    %112 = tpu.concatenate %105, %107, %109, %111 in 0 : vector<16x32xf32>, vector<16x32xf32>, vector<16x32xf32>, vector<16x32xf32> -> vector<64x32xf32>
    %113 = arith.truncf %112 : vector<64x32xf32> to vector<64x32xbf16>
    %114 = arith.truncf %103 : vector<16x32xf32> to vector<16x32xbf16>
    %cst_43 = arith.constant dense<0.000000e+00> : vector<64x16xf32>
    %115 = tpu.matmul %113, %114, %cst_43 {dimension_numbers = #tpu.dot_dimension_numbers<[1], [1], [0], [0], [0, 0, 1, 0], [], []>} : vector<64x32xbf16>, vector<16x32xbf16>, vector<64x16xf32> -> vector<64x16xf32>
    %116 = arith.addf %115, %72 : vector<64x16xf32>
    %cst_44 = arith.constant dense<0xFF800000> : vector<64xf32>
    %117 = vector.multi_reduction <maximumf>, %116, %cst_44 [1] : vector<64x16xf32> to vector<64xf32>
    %118 = vector.shape_cast %117 : vector<64xf32> to vector<64x1xf32>
    %119 = vector.broadcast %118 : vector<64x1xf32> to vector<64x16xf32>
    %120 = arith.subf %116, %119 : vector<64x16xf32>
    %121 = math.exp %120 : vector<64x16xf32>
    %cst_45 = arith.constant dense<0.000000e+00> : vector<64xf32>
    %122 = vector.multi_reduction <add>, %121, %cst_45 [1] : vector<64x16xf32> to vector<64xf32>
    %123 = vector.shape_cast %122 : vector<64xf32> to vector<64x1xf32>
    %124 = vector.broadcast %123 : vector<64x1xf32> to vector<64x16xf32>
    %125 = arith.divf %121, %124 : vector<64x16xf32>
    %126 = arith.truncf %125 : vector<64x16xf32> to vector<64x16xbf16>
    %127 = arith.truncf %91 : vector<16x32xf32> to vector<16x32xbf16>
    %cst_46 = arith.constant dense<0.000000e+00> : vector<64x32xf32>
    %128 = tpu.matmul %126, %127, %cst_46 {dimension_numbers = #tpu.dot_dimension_numbers<[1], [0], [0], [1], [0, 0, 1, 1], [], []>} : vector<64x16xbf16>, vector<16x32xbf16>, vector<64x32xf32> -> vector<64x32xf32>
    %129 = vector.extract_strided_slice %128 {offsets = [0, 0], sizes = [16, 32], strides = [1, 1]} : vector<64x32xf32> to vector<16x32xf32>
    %130 = vector.broadcast %41 : vector<1x32xf32> to vector<16x32xf32>
    %131 = arith.mulf %129, %130 : vector<16x32xf32>
    %cst_47 = arith.constant 0.000000e+00 : f32
    %132 = vector.broadcast %cst_47 : f32 to vector<16x32xf32>
    %133 = arith.addf %132, %131 : vector<16x32xf32>
    %134 = vector.extract_strided_slice %128 {offsets = [16, 0], sizes = [16, 32], strides = [1, 1]} : vector<64x32xf32> to vector<16x32xf32>
    %135 = vector.broadcast %49 : vector<1x32xf32> to vector<16x32xf32>
    %136 = arith.mulf %134, %135 : vector<16x32xf32>
    %137 = arith.addf %133, %136 : vector<16x32xf32>
    %138 = vector.extract_strided_slice %128 {offsets = [32, 0], sizes = [16, 32], strides = [1, 1]} : vector<64x32xf32> to vector<16x32xf32>
    %139 = vector.broadcast %57 : vector<1x32xf32> to vector<16x32xf32>
    %140 = arith.mulf %138, %139 : vector<16x32xf32>
    %141 = arith.addf %137, %140 : vector<16x32xf32>
    %142 = vector.extract_strided_slice %128 {offsets = [48, 0], sizes = [16, 32], strides = [1, 1]} : vector<64x32xf32> to vector<16x32xf32>
    %143 = vector.broadcast %65 : vector<1x32xf32> to vector<16x32xf32>
    %144 = arith.mulf %142, %143 : vector<16x32xf32>
    %145 = arith.addf %141, %144 : vector<16x32xf32>
    %c136 = arith.constant 136 : index
    %c0_48 = arith.constant 0 : index
    %146 = vector.load %arg3[%c136, %c0_48] : memref<584x32xbf16, #tpu.memory_space<vmem>>, vector<32x32xbf16>
    %147 = arith.truncf %145 : vector<16x32xf32> to vector<16x32xbf16>
    %cst_49 = arith.constant dense<0.000000e+00> : vector<16x32xf32>
    %148 = tpu.matmul %147, %146, %cst_49 {dimension_numbers = #tpu.dot_dimension_numbers<[1], [0], [0], [1], [0, 0, 1, 1], [], []>} : vector<16x32xbf16>, vector<32x32xbf16>, vector<16x32xf32> -> vector<16x32xf32>
    %149 = arith.addf %29, %148 : vector<16x32xf32>
    %c4 = arith.constant 4 : index
    %c0_50 = arith.constant 0 : index
    %150 = vector.load %arg6[%c4, %c0_50] : memref<44x32xf32, #tpu.memory_space<vmem>>, vector<1x32xf32>
    %151 = arith.mulf %149, %149 : vector<16x32xf32>
    %cst_51 = arith.constant dense<0.000000e+00> : vector<16xf32>
    %152 = vector.multi_reduction <add>, %151, %cst_51 [1] : vector<16x32xf32> to vector<16xf32>
    %153 = vector.shape_cast %152 : vector<16xf32> to vector<16x1xf32>
    %cst_52 = arith.constant 3.200000e+01 : f32
    %154 = vector.broadcast %cst_52 : f32 to vector<16x1xf32>
    %155 = arith.divf %153, %154 : vector<16x1xf32>
    %cst_53 = arith.constant 9.99999997E-7 : f32
    %156 = vector.broadcast %cst_53 : f32 to vector<16x1xf32>
    %157 = arith.addf %155, %156 : vector<16x1xf32>
    %158 = math.rsqrt %157 : vector<16x1xf32>
    %159 = vector.broadcast %158 : vector<16x1xf32> to vector<16x32xf32>
    %160 = arith.mulf %149, %159 : vector<16x32xf32>
    %161 = vector.broadcast %150 : vector<1x32xf32> to vector<16x32xf32>
    %162 = arith.mulf %160, %161 : vector<16x32xf32>
    %c0_54 = arith.constant 0 : index
    %c0_55 = arith.constant 0 : index
    %163 = vector.load %arg5[%c0_54, %c0_55] : memref<64x256xbf16, #tpu.memory_space<vmem>>, vector<32x256xbf16>
    %164 = arith.truncf %162 : vector<16x32xf32> to vector<16x32xbf16>
    %cst_56 = arith.constant dense<0.000000e+00> : vector<16x256xf32>
    %165 = tpu.matmul %164, %163, %cst_56 {dimension_numbers = #tpu.dot_dimension_numbers<[1], [0], [0], [1], [0, 0, 1, 1], [], []>} : vector<16x32xbf16>, vector<32x256xbf16>, vector<16x256xf32> -> vector<16x256xf32>
    %166 = vector.extract_strided_slice %165 {offsets = [0, 0], sizes = [16, 128], strides = [1, 1]} : vector<16x256xf32> to vector<16x128xf32>
    %167 = vector.extract_strided_slice %165 {offsets = [0, 128], sizes = [16, 128], strides = [1, 1]} : vector<16x256xf32> to vector<16x128xf32>
    %168 = arith.negf %166 : vector<16x128xf32>
    %169 = math.exp %168 : vector<16x128xf32>
    %cst_57 = arith.constant 1.000000e+00 : f32
    %170 = vector.broadcast %cst_57 : f32 to vector<16x128xf32>
    %171 = arith.addf %170, %169 : vector<16x128xf32>
    %172 = arith.divf %170, %171 : vector<16x128xf32>
    %173 = arith.mulf %166, %172 : vector<16x128xf32>
    %174 = arith.mulf %173, %167 : vector<16x128xf32>
    %c168 = arith.constant 168 : index
    %c0_58 = arith.constant 0 : index
    %175 = vector.load %arg3[%c168, %c0_58] : memref<584x32xbf16, #tpu.memory_space<vmem>>, vector<128x32xbf16>
    %176 = arith.truncf %174 : vector<16x128xf32> to vector<16x128xbf16>
    %cst_59 = arith.constant dense<0.000000e+00> : vector<16x32xf32>
    %177 = tpu.matmul %176, %175, %cst_59 {dimension_numbers = #tpu.dot_dimension_numbers<[1], [0], [0], [1], [0, 0, 1, 1], [], []>} : vector<16x128xbf16>, vector<128x32xbf16>, vector<16x32xf32> -> vector<16x32xf32>
    %178 = arith.addf %149, %177 : vector<16x32xf32>
    %c5 = arith.constant 5 : index
    %c0_60 = arith.constant 0 : index
    %179 = vector.load %arg6[%c5, %c0_60] : memref<44x32xf32, #tpu.memory_space<vmem>>, vector<1x32xf32>
    %180 = arith.mulf %178, %178 : vector<16x32xf32>
    %cst_61 = arith.constant dense<0.000000e+00> : vector<16xf32>
    %181 = vector.multi_reduction <add>, %180, %cst_61 [1] : vector<16x32xf32> to vector<16xf32>
    %182 = vector.shape_cast %181 : vector<16xf32> to vector<16x1xf32>
    %cst_62 = arith.constant 3.200000e+01 : f32
    %183 = vector.broadcast %cst_62 : f32 to vector<16x1xf32>
    %184 = arith.divf %182, %183 : vector<16x1xf32>
    %cst_63 = arith.constant 9.99999997E-7 : f32
    %185 = vector.broadcast %cst_63 : f32 to vector<16x1xf32>
    %186 = arith.addf %184, %185 : vector<16x1xf32>
    %187 = math.rsqrt %186 : vector<16x1xf32>
    %188 = vector.broadcast %187 : vector<16x1xf32> to vector<16x32xf32>
    %189 = arith.mulf %178, %188 : vector<16x32xf32>
    %190 = vector.broadcast %179 : vector<1x32xf32> to vector<16x32xf32>
    %191 = arith.mulf %189, %190 : vector<16x32xf32>
    %c32 = arith.constant 32 : index
    %c0_64 = arith.constant 0 : index
    %192 = vector.load %arg4[%c32, %c0_64] : memref<64x96xbf16, #tpu.memory_space<vmem>>, vector<32x96xbf16>
    %193 = arith.truncf %191 : vector<16x32xf32> to vector<16x32xbf16>
    %cst_65 = arith.constant dense<0.000000e+00> : vector<16x96xf32>
    %194 = tpu.matmul %193, %192, %cst_65 {dimension_numbers = #tpu.dot_dimension_numbers<[1], [0], [0], [1], [0, 0, 1, 1], [], []>} : vector<16x32xbf16>, vector<32x96xbf16>, vector<16x96xf32> -> vector<16x96xf32>
    %195 = vector.extract_strided_slice %194 {offsets = [0, 0], sizes = [16, 32], strides = [1, 1]} : vector<16x96xf32> to vector<16x32xf32>
    %196 = vector.extract_strided_slice %194 {offsets = [0, 32], sizes = [16, 32], strides = [1, 1]} : vector<16x96xf32> to vector<16x32xf32>
    %197 = vector.extract_strided_slice %194 {offsets = [0, 64], sizes = [16, 32], strides = [1, 1]} : vector<16x96xf32> to vector<16x32xf32>
    %198 = arith.mulf %195, %30 : vector<16x32xf32>
    %199 = arith.truncf %195 : vector<16x32xf32> to vector<16x32xbf16>
    %cst_66 = arith.constant dense<0.000000e+00> : vector<16x32xf32>
    %200 = tpu.matmul %199, %32, %cst_66 {dimension_numbers = #tpu.dot_dimension_numbers<[1], [0], [0], [1], [0, 0, 1, 1], [], []>} : vector<16x32xbf16>, vector<32x32xbf16>, vector<16x32xf32> -> vector<16x32xf32>
    %201 = arith.mulf %200, %31 : vector<16x32xf32>
    %202 = arith.addf %198, %201 : vector<16x32xf32>
    %cst_67 = arith.constant 0.353553385 : f32
    %203 = vector.broadcast %cst_67 : f32 to vector<16x32xf32>
    %204 = arith.mulf %202, %203 : vector<16x32xf32>
    %205 = arith.mulf %196, %30 : vector<16x32xf32>
    %206 = arith.truncf %196 : vector<16x32xf32> to vector<16x32xbf16>
    %cst_68 = arith.constant dense<0.000000e+00> : vector<16x32xf32>
    %207 = tpu.matmul %206, %32, %cst_68 {dimension_numbers = #tpu.dot_dimension_numbers<[1], [0], [0], [1], [0, 0, 1, 1], [], []>} : vector<16x32xbf16>, vector<32x32xbf16>, vector<16x32xf32> -> vector<16x32xf32>
    %208 = arith.mulf %207, %31 : vector<16x32xf32>
    %209 = arith.addf %205, %208 : vector<16x32xf32>
    %210 = vector.broadcast %41 : vector<1x32xf32> to vector<16x32xf32>
    %211 = arith.mulf %204, %210 : vector<16x32xf32>
    %212 = vector.broadcast %49 : vector<1x32xf32> to vector<16x32xf32>
    %213 = arith.mulf %204, %212 : vector<16x32xf32>
    %214 = vector.broadcast %57 : vector<1x32xf32> to vector<16x32xf32>
    %215 = arith.mulf %204, %214 : vector<16x32xf32>
    %216 = vector.broadcast %65 : vector<1x32xf32> to vector<16x32xf32>
    %217 = arith.mulf %204, %216 : vector<16x32xf32>
    %218 = tpu.concatenate %211, %213, %215, %217 in 0 : vector<16x32xf32>, vector<16x32xf32>, vector<16x32xf32>, vector<16x32xf32> -> vector<64x32xf32>
    %219 = arith.truncf %218 : vector<64x32xf32> to vector<64x32xbf16>
    %220 = arith.truncf %209 : vector<16x32xf32> to vector<16x32xbf16>
    %cst_69 = arith.constant dense<0.000000e+00> : vector<64x16xf32>
    %221 = tpu.matmul %219, %220, %cst_69 {dimension_numbers = #tpu.dot_dimension_numbers<[1], [1], [0], [0], [0, 0, 1, 0], [], []>} : vector<64x32xbf16>, vector<16x32xbf16>, vector<64x16xf32> -> vector<64x16xf32>
    %222 = arith.addf %221, %72 : vector<64x16xf32>
    %cst_70 = arith.constant dense<0xFF800000> : vector<64xf32>
    %223 = vector.multi_reduction <maximumf>, %222, %cst_70 [1] : vector<64x16xf32> to vector<64xf32>
    %224 = vector.shape_cast %223 : vector<64xf32> to vector<64x1xf32>
    %225 = vector.broadcast %224 : vector<64x1xf32> to vector<64x16xf32>
    %226 = arith.subf %222, %225 : vector<64x16xf32>
    %227 = math.exp %226 : vector<64x16xf32>
    %cst_71 = arith.constant dense<0.000000e+00> : vector<64xf32>
    %228 = vector.multi_reduction <add>, %227, %cst_71 [1] : vector<64x16xf32> to vector<64xf32>
    %229 = vector.shape_cast %228 : vector<64xf32> to vector<64x1xf32>
    %230 = vector.broadcast %229 : vector<64x1xf32> to vector<64x16xf32>
    %231 = arith.divf %227, %230 : vector<64x16xf32>
    %232 = arith.truncf %231 : vector<64x16xf32> to vector<64x16xbf16>
    %233 = arith.truncf %197 : vector<16x32xf32> to vector<16x32xbf16>
    %cst_72 = arith.constant dense<0.000000e+00> : vector<64x32xf32>
    %234 = tpu.matmul %232, %233, %cst_72 {dimension_numbers = #tpu.dot_dimension_numbers<[1], [0], [0], [1], [0, 0, 1, 1], [], []>} : vector<64x16xbf16>, vector<16x32xbf16>, vector<64x32xf32> -> vector<64x32xf32>
    %235 = vector.extract_strided_slice %234 {offsets = [0, 0], sizes = [16, 32], strides = [1, 1]} : vector<64x32xf32> to vector<16x32xf32>
    %236 = vector.broadcast %41 : vector<1x32xf32> to vector<16x32xf32>
    %237 = arith.mulf %235, %236 : vector<16x32xf32>
    %cst_73 = arith.constant 0.000000e+00 : f32
    %238 = vector.broadcast %cst_73 : f32 to vector<16x32xf32>
    %239 = arith.addf %238, %237 : vector<16x32xf32>
    %240 = vector.extract_strided_slice %234 {offsets = [16, 0], sizes = [16, 32], strides = [1, 1]} : vector<64x32xf32> to vector<16x32xf32>
    %241 = vector.broadcast %49 : vector<1x32xf32> to vector<16x32xf32>
    %242 = arith.mulf %240, %241 : vector<16x32xf32>
    %243 = arith.addf %239, %242 : vector<16x32xf32>
    %244 = vector.extract_strided_slice %234 {offsets = [32, 0], sizes = [16, 32], strides = [1, 1]} : vector<64x32xf32> to vector<16x32xf32>
    %245 = vector.broadcast %57 : vector<1x32xf32> to vector<16x32xf32>
    %246 = arith.mulf %244, %245 : vector<16x32xf32>
    %247 = arith.addf %243, %246 : vector<16x32xf32>
    %248 = vector.extract_strided_slice %234 {offsets = [48, 0], sizes = [16, 32], strides = [1, 1]} : vector<64x32xf32> to vector<16x32xf32>
    %249 = vector.broadcast %65 : vector<1x32xf32> to vector<16x32xf32>
    %250 = arith.mulf %248, %249 : vector<16x32xf32>
    %251 = arith.addf %247, %250 : vector<16x32xf32>
    %c296 = arith.constant 296 : index
    %c0_74 = arith.constant 0 : index
    %252 = vector.load %arg3[%c296, %c0_74] : memref<584x32xbf16, #tpu.memory_space<vmem>>, vector<32x32xbf16>
    %253 = arith.truncf %251 : vector<16x32xf32> to vector<16x32xbf16>
    %cst_75 = arith.constant dense<0.000000e+00> : vector<16x32xf32>
    %254 = tpu.matmul %253, %252, %cst_75 {dimension_numbers = #tpu.dot_dimension_numbers<[1], [0], [0], [1], [0, 0, 1, 1], [], []>} : vector<16x32xbf16>, vector<32x32xbf16>, vector<16x32xf32> -> vector<16x32xf32>
    %255 = arith.addf %178, %254 : vector<16x32xf32>
    %c6 = arith.constant 6 : index
    %c0_76 = arith.constant 0 : index
    %256 = vector.load %arg6[%c6, %c0_76] : memref<44x32xf32, #tpu.memory_space<vmem>>, vector<1x32xf32>
    %257 = arith.mulf %255, %255 : vector<16x32xf32>
    %cst_77 = arith.constant dense<0.000000e+00> : vector<16xf32>
    %258 = vector.multi_reduction <add>, %257, %cst_77 [1] : vector<16x32xf32> to vector<16xf32>
    %259 = vector.shape_cast %258 : vector<16xf32> to vector<16x1xf32>
    %cst_78 = arith.constant 3.200000e+01 : f32
    %260 = vector.broadcast %cst_78 : f32 to vector<16x1xf32>
    %261 = arith.divf %259, %260 : vector<16x1xf32>
    %cst_79 = arith.constant 9.99999997E-7 : f32
    %262 = vector.broadcast %cst_79 : f32 to vector<16x1xf32>
    %263 = arith.addf %261, %262 : vector<16x1xf32>
    %264 = math.rsqrt %263 : vector<16x1xf32>
    %265 = vector.broadcast %264 : vector<16x1xf32> to vector<16x32xf32>
    %266 = arith.mulf %255, %265 : vector<16x32xf32>
    %267 = vector.broadcast %256 : vector<1x32xf32> to vector<16x32xf32>
    %268 = arith.mulf %266, %267 : vector<16x32xf32>
    %c32_80 = arith.constant 32 : index
    %c0_81 = arith.constant 0 : index
    %269 = vector.load %arg5[%c32_80, %c0_81] : memref<64x256xbf16, #tpu.memory_space<vmem>>, vector<32x256xbf16>
    %270 = arith.truncf %268 : vector<16x32xf32> to vector<16x32xbf16>
    %cst_82 = arith.constant dense<0.000000e+00> : vector<16x256xf32>
    %271 = tpu.matmul %270, %269, %cst_82 {dimension_numbers = #tpu.dot_dimension_numbers<[1], [0], [0], [1], [0, 0, 1, 1], [], []>} : vector<16x32xbf16>, vector<32x256xbf16>, vector<16x256xf32> -> vector<16x256xf32>
    %272 = vector.extract_strided_slice %271 {offsets = [0, 0], sizes = [16, 128], strides = [1, 1]} : vector<16x256xf32> to vector<16x128xf32>
    %273 = vector.extract_strided_slice %271 {offsets = [0, 128], sizes = [16, 128], strides = [1, 1]} : vector<16x256xf32> to vector<16x128xf32>
    %274 = arith.negf %272 : vector<16x128xf32>
    %275 = math.exp %274 : vector<16x128xf32>
    %cst_83 = arith.constant 1.000000e+00 : f32
    %276 = vector.broadcast %cst_83 : f32 to vector<16x128xf32>
    %277 = arith.addf %276, %275 : vector<16x128xf32>
    %278 = arith.divf %276, %277 : vector<16x128xf32>
    %279 = arith.mulf %272, %278 : vector<16x128xf32>
    %280 = arith.mulf %279, %273 : vector<16x128xf32>
    %c328 = arith.constant 328 : index
    %c0_84 = arith.constant 0 : index
    %281 = vector.load %arg3[%c328, %c0_84] : memref<584x32xbf16, #tpu.memory_space<vmem>>, vector<128x32xbf16>
    %282 = arith.truncf %280 : vector<16x128xf32> to vector<16x128xbf16>
    %cst_85 = arith.constant dense<0.000000e+00> : vector<16x32xf32>
    %283 = tpu.matmul %282, %281, %cst_85 {dimension_numbers = #tpu.dot_dimension_numbers<[1], [0], [0], [1], [0, 0, 1, 1], [], []>} : vector<16x128xbf16>, vector<128x32xbf16>, vector<16x32xf32> -> vector<16x32xf32>
    %284 = arith.addf %255, %283 : vector<16x32xf32>
    %c7 = arith.constant 7 : index
    %c0_86 = arith.constant 0 : index
    %285 = vector.load %arg6[%c7, %c0_86] : memref<44x32xf32, #tpu.memory_space<vmem>>, vector<1x32xf32>
    %286 = arith.mulf %284, %284 : vector<16x32xf32>
    %cst_87 = arith.constant dense<0.000000e+00> : vector<16xf32>
    %287 = vector.multi_reduction <add>, %286, %cst_87 [1] : vector<16x32xf32> to vector<16xf32>
    %288 = vector.shape_cast %287 : vector<16xf32> to vector<16x1xf32>
    %cst_88 = arith.constant 3.200000e+01 : f32
    %289 = vector.broadcast %cst_88 : f32 to vector<16x1xf32>
    %290 = arith.divf %288, %289 : vector<16x1xf32>
    %cst_89 = arith.constant 9.99999997E-7 : f32
    %291 = vector.broadcast %cst_89 : f32 to vector<16x1xf32>
    %292 = arith.addf %290, %291 : vector<16x1xf32>
    %293 = math.rsqrt %292 : vector<16x1xf32>
    %294 = vector.broadcast %293 : vector<16x1xf32> to vector<16x32xf32>
    %295 = arith.mulf %284, %294 : vector<16x32xf32>
    %296 = vector.broadcast %285 : vector<1x32xf32> to vector<16x32xf32>
    %297 = arith.mulf %295, %296 : vector<16x32xf32>
    %c456 = arith.constant 456 : index
    %c0_90 = arith.constant 0 : index
    %298 = vector.load %arg3[%c456, %c0_90] : memref<584x32xbf16, #tpu.memory_space<vmem>>, vector<32x32xbf16>
    %299 = arith.truncf %29 : vector<16x32xf32> to vector<16x32xbf16>
    %cst_91 = arith.constant dense<0.000000e+00> : vector<16x32xf32>
    %300 = tpu.matmul %299, %298, %cst_91 {dimension_numbers = #tpu.dot_dimension_numbers<[1], [0], [0], [1], [0, 0, 1, 1], [], []>} : vector<16x32xbf16>, vector<32x32xbf16>, vector<16x32xf32> -> vector<16x32xf32>
    %c488 = arith.constant 488 : index
    %c0_92 = arith.constant 0 : index
    %301 = vector.load %arg3[%c488, %c0_92] : memref<584x32xbf16, #tpu.memory_space<vmem>>, vector<32x32xbf16>
    %302 = arith.truncf %297 : vector<16x32xf32> to vector<16x32xbf16>
    %cst_93 = arith.constant dense<0.000000e+00> : vector<16x32xf32>
    %303 = tpu.matmul %302, %301, %cst_93 {dimension_numbers = #tpu.dot_dimension_numbers<[1], [0], [0], [1], [0, 0, 1, 1], [], []>} : vector<16x32xbf16>, vector<32x32xbf16>, vector<16x32xf32> -> vector<16x32xf32>
    %304 = arith.addf %300, %303 : vector<16x32xf32>
    %c8_94 = arith.constant 8 : index
    %c0_95 = arith.constant 0 : index
    %305 = vector.load %arg6[%c8_94, %c0_95] : memref<44x32xf32, #tpu.memory_space<vmem>>, vector<1x32xf32>
    %306 = vector.broadcast %305 : vector<1x32xf32> to vector<16x32xf32>
    %307 = arith.addf %304, %306 : vector<16x32xf32>
    %c0_96 = arith.constant 0 : index
    %c0_97 = arith.constant 0 : index
    %308 = vector.load %arg8[%c0_96, %c0_97] : memref<16x32xf32, #tpu.memory_space<vmem>>, vector<16x32xf32>
    tpu.vector_store %arg8[%c0_96, %c0_97], %307 {strides = array<i32>} : memref<16x32xf32, #tpu.memory_space<vmem>>, vector<16x32xf32>,
    %309 = arith.truncf %307 : vector<16x32xf32> to vector<16x32xbf16>
    %c0_98 = arith.constant 0 : index
    %c0_99 = arith.constant 0 : index
    %310 = vector.load %arg2[%c0_98, %c0_99] : memref<24x2xi32, #tpu.memory_space<vmem>>, vector<24x1xi32>
    %c0_100 = arith.constant 0 : index
    %c1_101 = arith.constant 1 : index
    %311 = vector.load %arg2[%c0_100, %c1_101] : memref<24x2xi32, #tpu.memory_space<vmem>>, vector<24x1xi32>
    %312 = tpu.iota {dimensions = array<i32: 1>} : vector<24x16xi32>
    %313 = vector.broadcast %310 : vector<24x1xi32> to vector<24x16xi32>
    %314 = arith.cmpi eq, %312, %313 : vector<24x16xi32>
    %cst_102 = arith.constant 1.000000e+00 : f32
    %cst_103 = arith.constant 0.000000e+00 : f32
    %315 = vector.broadcast %cst_102 : f32 to vector<24x16xf32>
    %316 = vector.broadcast %cst_103 : f32 to vector<24x16xf32>
    %317 = arith.select %314, %315, %316 : vector<24x16xi1>, vector<24x16xf32>
    %318 = arith.truncf %317 : vector<24x16xf32> to vector<24x16xbf16>
    %319 = vector.broadcast %311 : vector<24x1xi32> to vector<24x16xi32>
    %320 = arith.cmpi eq, %312, %319 : vector<24x16xi32>
    %cst_104 = arith.constant 1.000000e+00 : f32
    %cst_105 = arith.constant 0.000000e+00 : f32
    %321 = vector.broadcast %cst_104 : f32 to vector<24x16xf32>
    %322 = vector.broadcast %cst_105 : f32 to vector<24x16xf32>
    %323 = arith.select %320, %321, %322 : vector<24x16xi1>, vector<24x16xf32>
    %324 = arith.truncf %323 : vector<24x16xf32> to vector<24x16xbf16>
    %cst_106 = arith.constant dense<0.000000e+00> : vector<24x32xf32>
    %325 = tpu.matmul %318, %309, %cst_106 {dimension_numbers = #tpu.dot_dimension_numbers<[1], [0], [0], [1], [0, 0, 1, 1], [], []>} : vector<24x16xbf16>, vector<16x32xbf16>, vector<24x32xf32> -> vector<24x32xf32>
    %cst_107 = arith.constant dense<0.000000e+00> : vector<24x32xf32>
    %326 = tpu.matmul %324, %309, %cst_107 {dimension_numbers = #tpu.dot_dimension_numbers<[1], [0], [0], [1], [0, 0, 1, 1], [], []>} : vector<24x16xbf16>, vector<16x32xbf16>, vector<24x32xf32> -> vector<24x32xf32>
    %c520 = arith.constant 520 : index
    %c0_108 = arith.constant 0 : index
    %327 = vector.load %arg3[%c520, %c0_108] : memref<584x32xbf16, #tpu.memory_space<vmem>>, vector<32x32xbf16>
    %328 = arith.truncf %325 : vector<24x32xf32> to vector<24x32xbf16>
    %cst_109 = arith.constant dense<0.000000e+00> : vector<24x32xf32>
    %329 = tpu.matmul %328, %327, %cst_109 {dimension_numbers = #tpu.dot_dimension_numbers<[1], [0], [0], [1], [0, 0, 1, 1], [], []>} : vector<24x32xbf16>, vector<32x32xbf16>, vector<24x32xf32> -> vector<24x32xf32>
    %c552 = arith.constant 552 : index
    %c0_110 = arith.constant 0 : index
    %330 = vector.load %arg3[%c552, %c0_110] : memref<584x32xbf16, #tpu.memory_space<vmem>>, vector<32x32xbf16>
    %331 = arith.truncf %326 : vector<24x32xf32> to vector<24x32xbf16>
    %cst_111 = arith.constant dense<0.000000e+00> : vector<24x32xf32>
    %332 = tpu.matmul %331, %330, %cst_111 {dimension_numbers = #tpu.dot_dimension_numbers<[1], [0], [0], [1], [0, 0, 1, 1], [], []>} : vector<24x32xbf16>, vector<32x32xbf16>, vector<24x32xf32> -> vector<24x32xf32>
    %333 = arith.addf %329, %332 : vector<24x32xf32>
    %c9 = arith.constant 9 : index
    %c0_112 = arith.constant 0 : index
    %334 = vector.load %arg6[%c9, %c0_112] : memref<44x32xf32, #tpu.memory_space<vmem>>, vector<1x32xf32>
    %335 = vector.broadcast %334 : vector<1x32xf32> to vector<24x32xf32>
    %336 = arith.addf %333, %335 : vector<24x32xf32>
    %cst_113 = arith.constant 0.000000e+00 : f32
    %337 = vector.broadcast %cst_113 : f32 to vector<24x32xf32>
    %338 = arith.maximumf %336, %337 : vector<24x32xf32>
    %c10 = arith.constant 10 : index
    %c0_114 = arith.constant 0 : index
    %339 = vector.load %arg6[%c10, %c0_114] : memref<44x32xf32, #tpu.memory_space<vmem>>, vector<1x32xf32>
    %340 = arith.truncf %339 : vector<1x32xf32> to vector<1x32xbf16>
    %341 = arith.truncf %338 : vector<24x32xf32> to vector<24x32xbf16>
    %cst_115 = arith.constant dense<0.000000e+00> : vector<1x24xf32>
    %342 = tpu.matmul %340, %341, %cst_115 {dimension_numbers = #tpu.dot_dimension_numbers<[1], [1], [0], [0], [0, 0, 1, 0], [], []>} : vector<1x32xbf16>, vector<24x32xbf16>, vector<1x24xf32> -> vector<1x24xf32>
    %c11 = arith.constant 11 : index
    %c0_116 = arith.constant 0 : index
    %343 = vector.load %arg6[%c11, %c0_116] : memref<44x32xf32, #tpu.memory_space<vmem>>, vector<1x1xf32>
    %344 = vector.broadcast %343 : vector<1x1xf32> to vector<1x24xf32>
    %345 = arith.addf %342, %344 : vector<1x24xf32>
    %346 = arith.negf %345 : vector<1x24xf32>
    %347 = math.exp %346 : vector<1x24xf32>
    %cst_117 = arith.constant 1.000000e+00 : f32
    %348 = vector.broadcast %cst_117 : f32 to vector<1x24xf32>
    %349 = arith.addf %348, %347 : vector<1x24xf32>
    %350 = arith.divf %348, %349 : vector<1x24xf32>
    %c0_118 = arith.constant 0 : index
    %c0_119 = arith.constant 0 : index
    %351 = vector.load %arg7[%c0_118, %c0_119] : memref<1x24xf32, #tpu.memory_space<vmem>>, vector<1x24xf32>
    tpu.vector_store %arg7[%c0_118, %c0_119], %350 {strides = array<i32>} : memref<1x24xf32, #tpu.memory_space<vmem>>, vector<1x24xf32>,
    return
  }
}

</mosaic_0001>

<llo_original>
// kernel: etgn_forward.1
$region0: #{etgn_forward.1}
  #allocation0 [shape = 'u32[]', space=smem, size = 0x4, offset = 0x4, fixed_abs, tag = 'smem constant byte address 0x4 - core index']
  #allocation1 [shape = 'u32[72,128]{1,0:T(1,128)}', space=vmem, size = 0x9000, scoped, tag = 'internal scratch']
  %s0 = inlined_call_operand.vmem [shape: bf16[16,16], index: 0, kind: input, shape index: {}]
  %s1 = inlined_call_operand.vmem [shape: bf16[16,8], index: 1, kind: input, shape index: {}]
  %s2 = inlined_call_operand.vmem [shape: s32[24,2], index: 2, kind: input, shape index: {}]
  %s3 = inlined_call_operand.vmem [shape: bf16[584,32], index: 3, kind: input, shape index: {}]
  %s4 = inlined_call_operand.vmem [shape: bf16[64,96], index: 4, kind: input, shape index: {}]
  %s5 = inlined_call_operand.vmem [shape: bf16[64,256], index: 5, kind: input, shape index: {}]
  %s6 = inlined_call_operand.vmem [shape: f32[44,32], index: 6, kind: input, shape index: {}]
  %s7 = inlined_call_operand.hbm [shape: f32[1,24], index: 7, kind: output, shape index: {0}]
  %s8 = inlined_call_operand.hbm [shape: f32[16,32], index: 8, kind: output, shape index: {1}]
  %9 = xla_tuple %s7, %s8
  %s10 = sld [smem:[#allocation0]]
  $region46: #{etgn_forward.1} parent=0
    _
  %s12 = ssub.s32 1, %s10
  %s13 = scalar_select 0, %s12, %s10
  $region1: #{etgn_forward.1} parent=0
    #allocation2 [shape = 'u8[512]{0}', space=vmem, size = 0x400, scoped, tag = 'output window, operand 0, single buffered']
    #allocation3 [shape = 's32[1]{0}', space=sflag, size = 0x4, scoped, tag = 'scoped memory for etgn_forward.1']
    #allocation4 [shape = 'u8[8192]{0}', space=vmem, size = 0x2000, scoped, tag = 'output window, operand 1, single buffered']
    #allocation5 [shape = 's32[1]{0}', space=sflag, size = 0x4, scoped, tag = 'scoped memory for etgn_forward.1']
    %14 = vsyncpa [#allocation3], 0
    %15 = vsyncpa [#allocation5], 0
    // Predicated region
    $region2: #{etgn_forward.1} parent=1 // pred_check
      _
    $region3: #{etgn_forward.1} parent=1 // pred_check_branch
      %17 = sbr.rel (0) target = $region5
    $region4: #{etgn_forward.1} parent=1 // pred_region
      _
    $region5: #{etgn_forward.1} parent=1 // pred_fallthru
      _
    // Predicated region
    $region6: #{etgn_forward.1} parent=1 // pred_check
      _
    $region7: #{etgn_forward.1} parent=1 // pred_check_branch
      %19 = sbr.rel (0) target = $region9
    $region8: #{etgn_forward.1} parent=1 // pred_region
      _
    $region9: #{etgn_forward.1} parent=1 // pred_fallthru
      _
    // Predicated region
    $region10: #{etgn_forward.1} parent=1 // pred_check
      _
    $region11: #{etgn_forward.1} parent=1 // pred_check_branch
      %21 = sbr.rel (0) target = $region13
    $region12: #{etgn_forward.1} parent=1 // pred_region
      _
    $region13: #{etgn_forward.1} parent=1 // pred_fallthru
      _
    // Predicated region
    $region14: #{etgn_forward.1} parent=1 // pred_check
      _
    $region15: #{etgn_forward.1} parent=1 // pred_check_branch
      %23 = sbr.rel (0) target = $region17
    $region16: #{etgn_forward.1} parent=1 // pred_region
      _
    $region17: #{etgn_forward.1} parent=1 // pred_fallthru
      _
    // Predicated region
    $region18: #{etgn_forward.1} parent=1 // pred_check
      _
    $region19: #{etgn_forward.1} parent=1 // pred_check_branch
      %25 = sbr.rel (0) target = $region21
    $region20: #{etgn_forward.1} parent=1 // pred_region
      _
    $region21: #{etgn_forward.1} parent=1 // pred_fallthru
      _
    // Predicated region
    $region22: #{etgn_forward.1} parent=1 // pred_check
      _
    $region23: #{etgn_forward.1} parent=1 // pred_check_branch
      %27 = sbr.rel (0) target = $region25
    $region24: #{etgn_forward.1} parent=1 // pred_region
      _
    $region25: #{etgn_forward.1} parent=1 // pred_fallthru
      _
    // Predicated region
    $region26: #{etgn_forward.1} parent=1 // pred_check
      _
    $region27: #{etgn_forward.1} parent=1 // pred_check_branch
      %29 = sbr.rel (0) target = $region29
    $region28: #{etgn_forward.1} parent=1 // pred_region
      _
    $region29: #{etgn_forward.1} parent=1 // pred_fallthru
      _
    %v31 = vld [vmem:[%s0] sm:$0xf]
    %v32 = vld [vmem:[%s0 + $0x4] sm:$0xf]
    %v33 = vld [vmem:[%s1] sm:$0xf]
    %v34 = vld [vmem:[%s1 + $0x4] sm:$0xf]
    %v35 = vld [vmem:[%s3] sm:$0xf]
    %v38 = vunpack.c.l.b16 %v33
    %v39 = vunpack.c.l.b16 %v34
    %v40 = vpack.c.b16 %v39, %v38
    %vm41 = vcmask 64512
    %v43 = vsel %vm41, %v40, 0
    %vm45 = vcmask 1043456
    %v47 = vsel %vm45, %v35, 0
    %49 = vmatpush.bf16.msra.mxu0 0
    %50 = vmatpush.bf16.msra.mxu0 0
    %51 = vmatpush.bf16.msra.mxu0 0
    %52 = vmatpush.bf16.msra.mxu0 0
    %53 = vmatpush.bf16.msra.mxu0 0
    %54 = vmatpush.bf16.msra.mxu0 0
    %55 = vmatpush.bf16.msra.mxu0 0
    %56 = vmatpush.bf16.msra.mxu0 %v47
    %57 = vmatmul.bf16.gmra.mxu0 %v43
    %v58 = vpop.f32.mrf.mxu0
    %v59 = vadd.f32 0.0, %v58
    %v60 = vpop.f32.mrf.mxu0
    %v61 = vadd.f32 0.0, %v60
    %62 = vdwg.mxu0
    %v63 = vpack.c.bf16 %v61, %v59
    %v64 = vld [vmem:[%s6] sm:$0x1]
    %v65 = vperm.slane %v64, 0
    %v68 = vunpack.c.l.b16 %v31
    %v69 = vunpack.c.l.b16 %v32
    %v70 = vpack.c.b16 %v69, %v68
    %vm71 = vcmask 130048
    %v73 = vsel %vm71, %v70, 0
    %75 = vmatpush.bf16.msra.mxu0 0
    %76 = vmatpush.bf16.msra.mxu0 0
    %77 = vmatpush.bf16.msra.mxu0 0
    %78 = vmatpush.bf16.msra.mxu0 0
    %79 = vmatpush.bf16.msra.mxu0 0
    %80 = vmatpush.bf16.msra.mxu0 0
    %81 = vmatpush.bf16.msra.mxu0 0
    %82 = vmatpush.bf16.msra.mxu0 %v63
    %83 = vmatmul.bf16.gmra.mxu0 %v73
    %v84 = vpop.f32.mrf.mxu0
    %v85 = vadd.f32 %v65, %v84
    %v86 = vpop.f32.mrf.mxu0
    %v87 = vadd.f32 %v65, %v86
    %88 = vdwg.mxu0
    %v89 = vld [vmem:[%s3 + $0x4] sm:$0xf]
    %v90 = vld [vmem:[%s3 + $0x8] sm:$0xf]
    %v91 = vld [vmem:[%s3 + $0xc] sm:$0xf]
    %v92 = vld [vmem:[%s3 + $0x10] sm:$0xf]
    %v93 = vpack.c.bf16 %v87, %v85
    %v98 = vunpack.c.l.b16 %v89
    %v99 = vunpack.c.l.b16 %v90
    %v100 = vunpack.c.l.b16 %v91
    %v101 = vunpack.c.l.b16 %v92
    %v102 = vpack.c.b16 %v99, %v98
    %v103 = vpack.c.b16 %v101, %v100
    %vm106 = vcmask 261120
    %v108 = vsel %vm106, %v93, 0
    %110 = vmatpush.bf16.msra.mxu0 0
    %111 = vmatpush.bf16.msra.mxu0 0
    %112 = vmatpush.bf16.msra.mxu0 0
    %113 = vmatpush.bf16.msra.mxu0 0
    %114 = vmatpush.bf16.msra.mxu0 0
    %115 = vmatpush.bf16.msra.mxu0 0
    %116 = vmatpush.bf16.msra.mxu0 %v103
    %117 = vmatpush.bf16.msra.mxu0 %v102
    %118 = vmatmul.bf16.gmra.mxu0 %v108
    %v119 = vpop.f32.mrf.mxu0
    %v120 = vadd.f32 0.0, %v119
    %v121 = vpop.f32.mrf.mxu0
    %v122 = vadd.f32 0.0, %v121
    %123 = vdwg.mxu0
    %v124 = vpack.c.bf16 %v122, %v120
    %v125 = vld [vmem:[%s6 + $0x1] sm:$0x1]
    %v126 = vperm.slane %v125, 0
    %127 = vmatpush.bf16.msra.mxu0 0
    %128 = vmatpush.bf16.msra.mxu0 0
    %129 = vmatpush.bf16.msra.mxu0 0
    %130 = vmatpush.bf16.msra.mxu0 0
    %131 = vmatpush.bf16.msra.mxu0 0
    %132 = vmatpush.bf16.msra.mxu0 0
    %133 = vmatpush.bf16.msra.mxu0 0
    %134 = vmatpush.bf16.msra.mxu0 %v124
    %135 = vmatmul.bf16.gmra.mxu0 %v73
    %v136 = vpop.f32.mrf.mxu0
    %v137 = vadd.f32 %v126, %v136
    %v138 = vpop.f32.mrf.mxu0
    %v139 = vadd.f32 %v126, %v138
    %140 = vdwg.mxu0
    %v141 = vld [vmem:[%s3 + $0x14] sm:$0xf]
    %v142 = vld [vmem:[%s3 + $0x18] sm:$0xf]
    %v143 = vld [vmem:[%s3 + $0x1c] sm:$0xf]
    %v144 = vld [vmem:[%s3 + $0x20] sm:$0xf]
    %v145 = vld [vmem:[%s3 + $0x24] sm:$0xf]
    %v146 = vld [vmem:[%s3 + $0x28] sm:$0xf]
    %v147 = vld [vmem:[%s3 + $0x2c] sm:$0xf]
    %v148 = vld [vmem:[%s3 + $0x30] sm:$0xf]
    %v149 = vpack.c.bf16 %v139, %v137
    %v154 = vunpack.c.l.b16 %v145
    %v155 = vunpack.c.l.b16 %v146
    %v156 = vunpack.c.l.b16 %v147
    %v157 = vunpack.c.l.b16 %v148
    %v158 = vpack.c.b16 %v155, %v154
    %v159 = vpack.c.b16 %v157, %v156
    %v163 = vsel %vm106, %v149, 0
    %165 = vmatpush.bf16.msra.mxu0 0
    %166 = vmatpush.bf16.msra.mxu0 0
    %167 = vmatpush.bf16.msra.mxu0 0
    %168 = vmatpush.bf16.msra.mxu0 0
    %169 = vmatpush.bf16.msra.mxu0 0
    %170 = vmatpush.bf16.msra.mxu0 0
    %171 = vmatpush.bf16.msra.mxu0 %v159
    %172 = vmatpush.bf16.msra.mxu0 %v158
    %173 = vmatmul.bf16.gmra.mxu0 %v163
    %v174 = vpop.f32.mrf.mxu0
    %v175 = vadd.f32 0.0, %v174
    %v176 = vpop.f32.mrf.mxu0
    %v177 = vadd.f32 0.0, %v176
    %178 = vdwg.mxu0
    %v183 = vunpack.c.l.b16 %v141
    %v184 = vunpack.c.l.b16 %v142
    %v185 = vunpack.c.l.b16 %v143
    %v186 = vunpack.c.l.b16 %v144
    %v187 = vpack.c.b16 %v184, %v183
    %v188 = vpack.c.b16 %v186, %v185
    %191 = vmatpush.bf16.msra.mxu0 0
    %192 = vmatpush.bf16.msra.mxu0 0
    %193 = vmatpush.bf16.msra.mxu0 0
    %194 = vmatpush.bf16.msra.mxu0 0
    %195 = vmatpush.bf16.msra.mxu0 0
    %196 = vmatpush.bf16.msra.mxu0 0
    %197 = vmatpush.bf16.msra.mxu0 %v188
    %198 = vmatpush.bf16.msra.mxu0 %v187
    %199 = vmatmul.bf16.gmra.mxu0 %v108
    %v200 = vpop.f32.mrf.mxu0
    %v201 = vadd.f32 %v175, %v200
    %v202 = vpop.f32.mrf.mxu0
    %v203 = vadd.f32 %v177, %v202
    %204 = vdwg.mxu0
    %v205 = vld [vmem:[%s6 + $0x2] sm:$0x1]
    %v206 = vperm.slane %v205, 0
    %v207 = vadd.f32 %v201, %v206
    %v208 = vadd.f32 %v203, %v206
    %v209 = vtanh.pop %v207
    %v210 = vtanh.pop %v208
    %v211 = vadd.f32 %v85, %v209
    %v212 = vadd.f32 %v87, %v210
    %v213 = vsub.f32 %v211, %v137
    %v214 = vsub.f32 %v212, %v139
    %v215 = vld [vmem:[%s6 + $0xc] sm:$0xff]
    %v216 = vld [vmem:[%s6 + $0x14] sm:$0xff]
    %v217 = vld [vmem:[%s6 + $0x1c] sm:$0xff]
    %v218 = vld [vmem:[%s6 + $0x24] sm:$0xff]
    %v219 = vld [vmem:[%s3 + $0x34] sm:$0xf]
    %v220 = vld [vmem:[%s3 + $0x38] sm:$0xf]
    %v221 = vld [vmem:[%s3 + $0x3c] sm:$0xf]
    %v222 = vld [vmem:[%s3 + $0x40] sm:$0xf]
    %v223 = vlaneseq
    %v224 = vand.u32 %v223, 127
    %vm225 = vcmp.ge.s32.totalorder %v224, 0
    %vm226 = vcmp.lt.s32.totalorder %v224, 8
    %vm227 = vmand %vm225, %vm226
    %v228 = vsel %vm227, 1.0, 0.0
    %vm229 = vcmp.ge.s32.totalorder %v224, 8
    %vm230 = vcmp.lt.s32.totalorder %v224, 16
    %vm231 = vmand %vm229, %vm230
    %v232 = vsel %vm231, 1.0, 0.0
    %vm233 = vcmp.ge.s32.totalorder %v224, 16
    %vm234 = vcmp.lt.s32.totalorder %v224, 24
    %vm235 = vmand %vm233, %vm234
    %v236 = vsel %vm235, 1.0, 0.0
    %vm237 = vcmp.ge.s32.totalorder %v224, 24
    %vm238 = vcmp.lt.s32.totalorder %v224, 32
    %vm239 = vmand %vm237, %vm238
    %v240 = vsel %vm239, 1.0, 0.0
    %v241 = vlaneseq
    %v242 = vshrl.u32 %v241, 7
    %v243 = vadd.s32 %v242, 8
    %vm244 = vcmp.le.s32.totalorder %v224, %v242
    %vm245 = vcmp.le.s32.totalorder %v224, %v243
    %v246 = vsel %vm244, 0.0, -1e+09
    %v247 = vsel %vm245, 0.0, -1e+09
    %v248 = vld [vmem:[%s6 + $0x3] sm:$0x1]
    %v249 = vmul.f32 %v213, %v213
    %v250 = vmul.f32 %v214, %v214
    %v251 = vsel %vm106, %v249, 0.0
    %252 = vadd.xlane.f32.xlu0 %v251
    %v253 = vpop.xlane.xlu0 %252
    %v254 = vsel %vm106, %v250, 0.0
    %255 = vadd.xlane.f32.xlu0 %v254
    %v256 = vpop.xlane.xlu0 %255
    %v257 = vrcp.pop 32.0
    %v258 = vmul.f32 32.0, %v257
    %v259 = vsub.f32 1.0, %v258
    %v260 = vmul.f32 %v257, %v259
    %v261 = vadd.f32 %v257, %v260
    %vm262 = vweird.f32 %v257
    %v263 = vsel %vm262, %v257, %v261
    %v264 = vmul.f32 %v253, %v263
    %v265 = vmul.f32 %v256, %v263
    %v266 = vadd.f32 %v264, 1e-06
    %v267 = vadd.f32 %v265, 1e-06
    %v268 = vrsqrt.pop %v266
    %v269 = vmul.f32 %v268, %v266
    %v270 = vmul.f32 %v269, %v268
    %v271 = vmul.f32 0.5, %v270
    %v272 = vsub.f32 1.5, %v271
    %v273 = vmul.f32 %v268, %v272
    %vm274 = vweird.f32 %v266
    %vm275 = vweird.f32 %v268
    %vm276 = vmor %vm274, %vm275
    %v277 = vsel %vm276, %v268, %v273
    %v278 = vrsqrt.pop %v267
    %v279 = vmul.f32 %v278, %v267
    %v280 = vmul.f32 %v279, %v278
    %v281 = vmul.f32 0.5, %v280
    %v282 = vsub.f32 1.5, %v281
    %v283 = vmul.f32 %v278, %v282
    %vm284 = vweird.f32 %v267
    %vm285 = vweird.f32 %v278
    %vm286 = vmor %vm284, %vm285
    %v287 = vsel %vm286, %v278, %v283
    %v288 = vmul.f32 %v213, %v277
    %v289 = vmul.f32 %v214, %v287
    %v290 = vperm.slane %v248, 0
    %v291 = vmul.f32 %v288, %v290
    %v292 = vmul.f32 %v289, %v290
    %v293 = vld [vmem:[%s4] sm:$0xf]
    %v294 = vld [vmem:[%s4 + $0x4] sm:$0xf]
    %v295 = vld [vmem:[%s4 + $0x8] sm:$0xf]
    %v296 = vld [vmem:[%s4 + $0xc] sm:$0xf]
    %v297 = vpack.c.bf16 %v292, %v291
    %v302 = vunpack.c.l.b16 %v293
    %v303 = vunpack.c.l.b16 %v294
    %v304 = vunpack.c.l.b16 %v295
    %v305 = vunpack.c.l.b16 %v296
    %v306 = vpack.c.b16 %v303, %v302
    %v307 = vpack.c.b16 %v305, %v304
    %v311 = vsel %vm106, %v297, 0
    %313 = vmatpush.bf16.msra.mxu0 0
    %314 = vmatpush.bf16.msra.mxu0 0
    %315 = vmatpush.bf16.msra.mxu0 0
    %316 = vmatpush.bf16.msra.mxu0 0
    %317 = vmatpush.bf16.msra.mxu0 0
    %318 = vmatpush.bf16.msra.mxu0 0
    %319 = vmatpush.bf16.msra.mxu0 %v307
    %320 = vmatpush.bf16.msra.mxu0 %v306
    %321 = vmatmul.bf16.gmra.mxu0 %v311
    %v322 = vpop.f32.mrf.mxu0
    %v323 = vadd.f32 0.0, %v322
    %v324 = vpop.f32.mrf.mxu0
    %v325 = vadd.f32 0.0, %v324
    %326 = vdwg.mxu0
    %v327 = vmul.f32 %v323, %v215
    %v328 = vmul.f32 %v325, %v216
    %v329 = vpack.c.bf16 %v325, %v323
    %v334 = vunpack.c.l.b16 %v219
    %v335 = vunpack.c.l.b16 %v220
    %v336 = vunpack.c.l.b16 %v221
    %v337 = vunpack.c.l.b16 %v222
    %v338 = vpack.c.b16 %v335, %v334
    %v339 = vpack.c.b16 %v337, %v336
    %v343 = vsel %vm106, %v329, 0
    %345 = vmatpush.bf16.msra.mxu0 0
    %346 = vmatpush.bf16.msra.mxu0 0
    %347 = vmatpush.bf16.msra.mxu0 0
    %348 = vmatpush.bf16.msra.mxu0 0
    %349 = vmatpush.bf16.msra.mxu0 0
    %350 = vmatpush.bf16.msra.mxu0 0
    %351 = vmatpush.bf16.msra.mxu0 %v339
    %352 = vmatpush.bf16.msra.mxu0 %v338
    %353 = vmatmul.bf16.gmra.mxu0 %v343
    %v354 = vpop.f32.mrf.mxu0
    %v355 = vadd.f32 0.0, %v354
    %v356 = vpop.f32.mrf.mxu0
    %v357 = vadd.f32 0.0, %v356
    %358 = vdwg.mxu0
    %v359 = vmul.f32 %v355, %v217
    %v360 = vmul.f32 %v357, %v218
    %v361 = vadd.f32 %v327, %v359
    %v362 = vadd.f32 %v328, %v360
    %v363 = vmul.f32 %v361, 0.35355338
    %v364 = vmul.f32 %v362, 0.35355338
    %367 = vrot.lane.b32.xlu0 %v215, 32
    %v368 = vpop.permute.xlu0 %367
    %369 = vrot.lane.b32.xlu0 %v216, 32
    %v370 = vpop.permute.xlu0 %369
    %v373 = vmul.f32 %v323, %v368
    %v374 = vmul.f32 %v325, %v370
    %376 = vrot.lane.b32.xlu0 %v329, 96
    %v377 = vpop.permute.xlu0 %376
    %v379 = vsel %vm106, %v377, 0
    %381 = vmatpush.bf16.msra.mxu0 0
    %382 = vmatpush.bf16.msra.mxu0 0
    %383 = vmatpush.bf16.msra.mxu0 0
    %384 = vmatpush.bf16.msra.mxu0 0
    %385 = vmatpush.bf16.msra.mxu0 0
    %386 = vmatpush.bf16.msra.mxu0 0
    %387 = vmatpush.bf16.msra.mxu0 %v339
    %388 = vmatpush.bf16.msra.mxu0 %v338
    %389 = vmatmul.bf16.gmra.mxu0 %v379
    %v390 = vpop.f32.mrf.mxu0
    %v391 = vadd.f32 0.0, %v390
    %v392 = vpop.f32.mrf.mxu0
    %v393 = vadd.f32 0.0, %v392
    %394 = vdwg.mxu0
    %v395 = vmul.f32 %v391, %v217
    %v396 = vmul.f32 %v393, %v218
    %399 = vrot.lane.b32.xlu0 %v395, 32
    %v400 = vpop.permute.xlu0 %399
    %401 = vrot.lane.b32.xlu0 %v396, 32
    %v402 = vpop.permute.xlu0 %401
    %v405 = vadd.f32 %v373, %v400
    %v406 = vadd.f32 %v374, %v402
    %v407 = vmul.f32 %v363, %v228
    %v408 = vmul.f32 %v364, %v228
    %v409 = vmul.f32 %v363, %v232
    %v410 = vmul.f32 %v364, %v232
    %v411 = vmul.f32 %v363, %v236
    %v412 = vmul.f32 %v364, %v236
    %v413 = vmul.f32 %v363, %v240
    %v414 = vmul.f32 %v364, %v240
    %v415 = vpack.c.bf16 %v408, %v407
    %v416 = vpack.c.bf16 %v410, %v409
    %v417 = vpack.c.bf16 %v412, %v411
    %v418 = vpack.c.bf16 %v414, %v413
    %v419 = vpack.c.bf16 %v406, %v405
    %421 = vrot.lane.b32.xlu0 %v419, 96
    %v422 = vpop.permute.xlu0 %421
    %v424 = vsel %vm106, %v415, 0
    %v427 = vsel %vm106, %v416, 0
    %v430 = vsel %vm106, %v417, 0
    %v433 = vsel %vm106, %v418, 0
    %v436 = vsel %vm106, %v422, 0
    %438 = vmatpush.bf16.xpose.msra.mxu0 0
    %439 = vmatpush.bf16.xpose.msra.mxu0 0
    %440 = vmatpush.bf16.xpose.msra.mxu0 0
    %441 = vmatpush.bf16.xpose.msra.mxu0 0
    %442 = vmatpush.bf16.xpose.msra.mxu0 0
    %443 = vmatpush.bf16.xpose.msra.mxu0 0
    %444 = vmatpush.bf16.xpose.msra.mxu0 0
    %445 = vmatpush.bf16.xpose.msra.mxu0 %v436
    %446 = vmatmul.bf16.gmra.mxu0 %v424
    %v447 = vpop.f32.mrf.mxu0
    %v448 = vadd.f32 %v246, %v447
    %v449 = vpop.f32.mrf.mxu0
    %v450 = vadd.f32 %v247, %v449
    %451 = vmatmul.bf16.gmra.mxu0 %v427
    %v452 = vpop.f32.mrf.mxu0
    %v453 = vadd.f32 %v246, %v452
    %v454 = vpop.f32.mrf.mxu0
    %v455 = vadd.f32 %v247, %v454
    %456 = vmatmul.bf16.gmra.mxu0 %v430
    %v457 = vpop.f32.mrf.mxu0
    %v458 = vadd.f32 %v246, %v457
    %v459 = vpop.f32.mrf.mxu0
    %v460 = vadd.f32 %v247, %v459
    %461 = vmatmul.bf16.gmra.mxu0 %v433
    %v462 = vpop.f32.mrf.mxu0
    %v463 = vadd.f32 %v246, %v462
    %v464 = vpop.f32.mrf.mxu0
    %v465 = vadd.f32 %v247, %v464
    %466 = vdwg.mxu0
    %v467 = vsel %vm71, %v448, -inf
    %468 = vmax.xlane.f32.xlu0 %v467
    %v469 = vpop.xlane.xlu0 %468
    %v470 = vsel %vm71, %v450, -inf
    %471 = vmax.xlane.f32.xlu0 %v470
    %v472 = vpop.xlane.xlu0 %471
    %v473 = vsel %vm71, %v453, -inf
    %474 = vmax.xlane.f32.xlu0 %v473
    %v475 = vpop.xlane.xlu0 %474
    %v476 = vsel %vm71, %v455, -inf
    %477 = vmax.xlane.f32.xlu0 %v476
    %v478 = vpop.xlane.xlu0 %477
    %v479 = vsel %vm71, %v458, -inf
    %480 = vmax.xlane.f32.xlu0 %v479
    %v481 = vpop.xlane.xlu0 %480
    %v482 = vsel %vm71, %v460, -inf
    %483 = vmax.xlane.f32.xlu0 %v482
    %v484 = vpop.xlane.xlu0 %483
    %v485 = vsel %vm71, %v463, -inf
    %486 = vmax.xlane.f32.xlu0 %v485
    %v487 = vpop.xlane.xlu0 %486
    %v488 = vsel %vm71, %v465, -inf
    %489 = vmax.xlane.f32.xlu0 %v488
    %v490 = vpop.xlane.xlu0 %489
    %v491 = vsub.f32 %v448, %v469
    %v492 = vsub.f32 %v450, %v472
    %v493 = vsub.f32 %v453, %v475
    %v494 = vsub.f32 %v455, %v478
    %v495 = vsub.f32 %v458, %v481
    %v496 = vsub.f32 %v460, %v484
    %v497 = vsub.f32 %v463, %v487
    %v498 = vsub.f32 %v465, %v490
    %v499 = vmul.f32 %v491, 1.442695
    %v500 = vpow.pop %v499
    %v501 = vmul.f32 %v492, 1.442695
    %v502 = vpow.pop %v501
    %v503 = vmul.f32 %v493, 1.442695
    %v504 = vpow.pop %v503
    %v505 = vmul.f32 %v494, 1.442695
    %v506 = vpow.pop %v505
    %v507 = vmul.f32 %v495, 1.442695
    %v508 = vpow.pop %v507
    %v509 = vmul.f32 %v496, 1.442695
    %v510 = vpow.pop %v509
    %v511 = vmul.f32 %v497, 1.442695
    %v512 = vpow.pop %v511
    %v513 = vmul.f32 %v498, 1.442695
    %v514 = vpow.pop %v513
    %v515 = vsel %vm71, %v500, 0.0
    %516 = vadd.xlane.f32.xlu0 %v515
    %v517 = vpop.xlane.xlu0 %516
    %v518 = vsel %vm71, %v502, 0.0
    %519 = vadd.xlane.f32.xlu0 %v518
    %v520 = vpop.xlane.xlu0 %519
    %v521 = vsel %vm71, %v504, 0.0
    %522 = vadd.xlane.f32.xlu0 %v521
    %v523 = vpop.xlane.xlu0 %522
    %v524 = vsel %vm71, %v506, 0.0
    %525 = vadd.xlane.f32.xlu0 %v524
    %v526 = vpop.xlane.xlu0 %525
    %v527 = vsel %vm71, %v508, 0.0
    %528 = vadd.xlane.f32.xlu0 %v527
    %v529 = vpop.xlane.xlu0 %528
    %v530 = vsel %vm71, %v510, 0.0
    %531 = vadd.xlane.f32.xlu0 %v530
    %v532 = vpop.xlane.xlu0 %531
    %v533 = vsel %vm71, %v512, 0.0
    %534 = vadd.xlane.f32.xlu0 %v533
    %v535 = vpop.xlane.xlu0 %534
    %v536 = vsel %vm71, %v514, 0.0
    %537 = vadd.xlane.f32.xlu0 %v536
    %v538 = vpop.xlane.xlu0 %537
    %v539 = vrcp.pop %v517
    %v540 = vmul.f32 %v517, %v539
    %v541 = vsub.f32 1.0, %v540
    %v542 = vmul.f32 %v539, %v541
    %v543 = vadd.f32 %v539, %v542
    %vm544 = vweird.f32 %v517
    %vm545 = vweird.f32 %v539
    %vm546 = vmor %vm544, %vm545
    %v547 = vsel %vm546, %v539, %v543
    %v548 = vand.u32 2147483647, %v517
    %vm549 = vcmp.eq.f32.partialorder %v548, 8.507059e+37
    %v550 = vand.u32 %v517, 2147483648
    %v551 = vor.u32 1.1754944e-38, %v550
    %v552 = vsel %vm549, %v551, %v547
    %v553 = vmul.f32 %v500, %v552
    %v554 = vrcp.pop %v520
    %v555 = vmul.f32 %v520, %v554
    %v556 = vsub.f32 1.0, %v555
    %v557 = vmul.f32 %v554, %v556
    %v558 = vadd.f32 %v554, %v557
    %vm559 = vweird.f32 %v520
    %vm560 = vweird.f32 %v554
    %vm561 = vmor %vm559, %vm560
    %v562 = vsel %vm561, %v554, %v558
    %v563 = vand.u32 2147483647, %v520
    %vm564 = vcmp.eq.f32.partialorder %v563, 8.507059e+37
    %v565 = vand.u32 %v520, 2147483648
    %v566 = vor.u32 1.1754944e-38, %v565
    %v567 = vsel %vm564, %v566, %v562
    %v568 = vmul.f32 %v502, %v567
    %v569 = vrcp.pop %v523
    %v570 = vmul.f32 %v523, %v569
    %v571 = vsub.f32 1.0, %v570
    %v572 = vmul.f32 %v569, %v571
    %v573 = vadd.f32 %v569, %v572
    %vm574 = vweird.f32 %v523
    %vm575 = vweird.f32 %v569
    %vm576 = vmor %vm574, %vm575
    %v577 = vsel %vm576, %v569, %v573
    %v578 = vand.u32 2147483647, %v523
    %vm579 = vcmp.eq.f32.partialorder %v578, 8.507059e+37
    %v580 = vand.u32 %v523, 2147483648
    %v581 = vor.u32 1.1754944e-38, %v580
    %v582 = vsel %vm579, %v581, %v577
    %v583 = vmul.f32 %v504, %v582
    %v584 = vrcp.pop %v526
    %v585 = vmul.f32 %v526, %v584
    %v586 = vsub.f32 1.0, %v585
    %v587 = vmul.f32 %v584, %v586
    %v588 = vadd.f32 %v584, %v587
    %vm589 = vweird.f32 %v526
    %vm590 = vweird.f32 %v584
    %vm591 = vmor %vm589, %vm590
    %v592 = vsel %vm591, %v584, %v588
    %v593 = vand.u32 2147483647, %v526
    %vm594 = vcmp.eq.f32.partialorder %v593, 8.507059e+37
    %v595 = vand.u32 %v526, 2147483648
    %v596 = vor.u32 1.1754944e-38, %v595
    %v597 = vsel %vm594, %v596, %v592
    %v598 = vmul.f32 %v506, %v597
    %v599 = vrcp.pop %v529
    %v600 = vmul.f32 %v529, %v599
    %v601 = vsub.f32 1.0, %v600
    %v602 = vmul.f32 %v599, %v601
    %v603 = vadd.f32 %v599, %v602
    %vm604 = vweird.f32 %v529
    %vm605 = vweird.f32 %v599
    %vm606 = vmor %vm604, %vm605
    %v607 = vsel %vm606, %v599, %v603
    %v608 = vand.u32 2147483647, %v529
    %vm609 = vcmp.eq.f32.partialorder %v608, 8.507059e+37
    %v610 = vand.u32 %v529, 2147483648
    %v611 = vor.u32 1.1754944e-38, %v610
    %v612 = vsel %vm609, %v611, %v607
    %v613 = vmul.f32 %v508, %v612
    %v614 = vrcp.pop %v532
    %v615 = vmul.f32 %v532, %v614
    %v616 = vsub.f32 1.0, %v615
    %v617 = vmul.f32 %v614, %v616
    %v618 = vadd.f32 %v614, %v617
    %vm619 = vweird.f32 %v532
    %vm620 = vweird.f32 %v614
    %vm621 = vmor %vm619, %vm620
    %v622 = vsel %vm621, %v614, %v618
    %v623 = vand.u32 2147483647, %v532
    %vm624 = vcmp.eq.f32.partialorder %v623, 8.507059e+37
    %v625 = vand.u32 %v532, 2147483648
    %v626 = vor.u32 1.1754944e-38, %v625
    %v627 = vsel %vm624, %v626, %v622
    %v628 = vmul.f32 %v510, %v627
    %v629 = vrcp.pop %v535
    %v630 = vmul.f32 %v535, %v629
    %v631 = vsub.f32 1.0, %v630
    %v632 = vmul.f32 %v629, %v631
    %v633 = vadd.f32 %v629, %v632
    %vm634 = vweird.f32 %v535
    %vm635 = vweird.f32 %v629
    %vm636 = vmor %vm634, %vm635
    %v637 = vsel %vm636, %v629, %v633
    %v638 = vand.u32 2147483647, %v535
    %vm639 = vcmp.eq.f32.partialorder %v638, 8.507059e+37
    %v640 = vand.u32 %v535, 2147483648
    %v641 = vor.u32 1.1754944e-38, %v640
    %v642 = vsel %vm639, %v641, %v637
    %v643 = vmul.f32 %v512, %v642
    %v644 = vrcp.pop %v538
    %v645 = vmul.f32 %v538, %v644
    %v646 = vsub.f32 1.0, %v645
    %v647 = vmul.f32 %v644, %v646
    %v648 = vadd.f32 %v644, %v647
    %vm649 = vweird.f32 %v538
    %vm650 = vweird.f32 %v644
    %vm651 = vmor %vm649, %vm650
    %v652 = vsel %vm651, %v644, %v648
    %v653 = vand.u32 2147483647, %v538
    %vm654 = vcmp.eq.f32.partialorder %v653, 8.507059e+37
    %v655 = vand.u32 %v538, 2147483648
    %v656 = vor.u32 1.1754944e-38, %v655
    %v657 = vsel %vm654, %v656, %v652
    %v658 = vmul.f32 %v514, %v657
    %v659 = vpack.c.bf16 %v568, %v553
    %v660 = vpack.c.bf16 %v598, %v583
    %v661 = vpack.c.bf16 %v628, %v613
    %v662 = vpack.c.bf16 %v658, %v643
    %663 = vrot.lane.b32.xlu0 %v329, 64
    %v664 = vpop.permute.xlu0 %663
    %v667 = vsel %vm71, %v659, 0
    %v670 = vsel %vm71, %v660, 0
    %v673 = vsel %vm71, %v661, 0
    %v676 = vsel %vm71, %v662, 0
    %678 = vmatpush.bf16.msra.mxu0 0
    %679 = vmatpush.bf16.msra.mxu0 0
    %680 = vmatpush.bf16.msra.mxu0 0
    %681 = vmatpush.bf16.msra.mxu0 0
    %682 = vmatpush.bf16.msra.mxu0 0
    %683 = vmatpush.bf16.msra.mxu0 0
    %684 = vmatpush.bf16.msra.mxu0 0
    %685 = vmatpush.bf16.msra.mxu0 %v664
    %686 = vmatmul.bf16.gmra.mxu0 %v667
    %v687 = vpop.f32.mrf.mxu0
    %v688 = vadd.f32 0.0, %v687
    %v689 = vpop.f32.mrf.mxu0
    %v690 = vadd.f32 0.0, %v689
    %691 = vmatmul.bf16.gmra.mxu0 %v670
    %v692 = vpop.f32.mrf.mxu0
    %v693 = vadd.f32 0.0, %v692
    %v694 = vpop.f32.mrf.mxu0
    %v695 = vadd.f32 0.0, %v694
    %696 = vmatmul.bf16.gmra.mxu0 %v673
    %v697 = vpop.f32.mrf.mxu0
    %v698 = vadd.f32 0.0, %v697
    %v699 = vpop.f32.mrf.mxu0
    %v700 = vadd.f32 0.0, %v699
    %701 = vmatmul.bf16.gmra.mxu0 %v676
    %v702 = vpop.f32.mrf.mxu0
    %v703 = vadd.f32 0.0, %v702
    %v704 = vpop.f32.mrf.mxu0
    %v705 = vadd.f32 0.0, %v704
    %706 = vdwg.mxu0
    %v707 = vmul.f32 %v688, %v228
    %v708 = vmul.f32 %v690, %v228
    %v709 = vadd.f32 %v707, 0.0
    %v710 = vadd.f32 %v708, 0.0
    %v711 = vmul.f32 %v693, %v232
    %v712 = vmul.f32 %v695, %v232
    %v713 = vadd.f32 %v709, %v711
    %v714 = vadd.f32 %v710, %v712
    %v715 = vmul.f32 %v698, %v236
    %v716 = vmul.f32 %v700, %v236
    %v717 = vadd.f32 %v713, %v715
    %v718 = vadd.f32 %v714, %v716
    %v719 = vmul.f32 %v703, %v240
    %v720 = vmul.f32 %v705, %v240
    %v721 = vadd.f32 %v717, %v719
    %v722 = vadd.f32 %v718, %v720
    %v723 = vld [vmem:[%s3 + $0x44] sm:$0xf]
    %v724 = vld [vmem:[%s3 + $0x48] sm:$0xf]
    %v725 = vld [vmem:[%s3 + $0x4c] sm:$0xf]
    %v726 = vld [vmem:[%s3 + $0x50] sm:$0xf]
    %v727 = vpack.c.bf16 %v722, %v721
    %v732 = vunpack.c.l.b16 %v723
    %v733 = vunpack.c.l.b16 %v724
    %v734 = vunpack.c.l.b16 %v725
    %v735 = vunpack.c.l.b16 %v726
    %v736 = vpack.c.b16 %v733, %v732
    %v737 = vpack.c.b16 %v735, %v734
    %v741 = vsel %vm106, %v727, 0
    %743 = vmatpush.bf16.msra.mxu0 0
    %744 = vmatpush.bf16.msra.mxu0 0
    %745 = vmatpush.bf16.msra.mxu0 0
    %746 = vmatpush.bf16.msra.mxu0 0
    %747 = vmatpush.bf16.msra.mxu0 0
    %748 = vmatpush.bf16.msra.mxu0 0
    %749 = vmatpush.bf16.msra.mxu0 %v737
    %750 = vmatpush.bf16.msra.mxu0 %v736
    %751 = vmatmul.bf16.gmra.mxu0 %v741
    %v752 = vpop.f32.mrf.mxu0
    %v753 = vadd.f32 0.0, %v752
    %v754 = vpop.f32.mrf.mxu0
    %v755 = vadd.f32 0.0, %v754
    %756 = vdwg.mxu0
    %v757 = vadd.f32 %v213, %v753
    %v758 = vadd.f32 %v214, %v755
    %v759 = vld [vmem:[%s6 + $0x4] sm:$0x1]
    %v760 = vmul.f32 %v757, %v757
    %v761 = vmul.f32 %v758, %v758
    %v762 = vsel %vm106, %v760, 0.0
    %763 = vadd.xlane.f32.xlu0 %v762
    %v764 = vpop.xlane.xlu0 %763
    %v765 = vsel %vm106, %v761, 0.0
    %766 = vadd.xlane.f32.xlu0 %v765
    %v767 = vpop.xlane.xlu0 %766
    %v768 = vmul.f32 %v764, %v263
    %v769 = vmul.f32 %v767, %v263
    %v770 = vadd.f32 %v768, 1e-06
    %v771 = vadd.f32 %v769, 1e-06
    %v772 = vrsqrt.pop %v770
    %v773 = vmul.f32 %v772, %v770
    %v774 = vmul.f32 %v773, %v772
    %v775 = vmul.f32 0.5, %v774
    %v776 = vsub.f32 1.5, %v775
    %v777 = vmul.f32 %v772, %v776
    %vm778 = vweird.f32 %v770
    %vm779 = vweird.f32 %v772
    %vm780 = vmor %vm778, %vm779
    %v781 = vsel %vm780, %v772, %v777
    %v782 = vrsqrt.pop %v771
    %v783 = vmul.f32 %v782, %v771
    %v784 = vmul.f32 %v783, %v782
    %v785 = vmul.f32 0.5, %v784
    %v786 = vsub.f32 1.5, %v785
    %v787 = vmul.f32 %v782, %v786
    %vm788 = vweird.f32 %v771
    %vm789 = vweird.f32 %v782
    %vm790 = vmor %vm788, %vm789
    %v791 = vsel %vm790, %v782, %v787
    %v792 = vmul.f32 %v757, %v781
    %v793 = vmul.f32 %v758, %v791
    %v794 = vperm.slane %v759, 0
    %v795 = vmul.f32 %v792, %v794
    %v796 = vmul.f32 %v793, %v794
    %v797 = vld [vmem:[%s5] sm:$0xff]
    %v798 = vld [vmem:[%s5 + $0x8] sm:$0xff]
    %v799 = vld [vmem:[%s5 + $0x10] sm:$0xff]
    %v800 = vld [vmem:[%s5 + $0x18] sm:$0xff]
    %v801 = vpack.c.bf16 %v796, %v795
    %v806 = vunpack.c.l.b16 %v797
    %v807 = vunpack.c.h.b16 %v797
    %v808 = vunpack.c.l.b16 %v798
    %v809 = vunpack.c.h.b16 %v798
    %v810 = vunpack.c.l.b16 %v799
    %v811 = vunpack.c.h.b16 %v799
    %v812 = vunpack.c.l.b16 %v800
    %v813 = vunpack.c.h.b16 %v800
    %v814 = vpack.c.b16 %v808, %v806
    %v815 = vpack.c.b16 %v809, %v807
    %v816 = vpack.c.b16 %v812, %v810
    %v817 = vpack.c.b16 %v813, %v811
    %v823 = vsel %vm106, %v801, 0
    %825 = vmatpush.bf16.msra.mxu0 0
    %826 = vmatpush.bf16.msra.mxu0 0
    %827 = vmatpush.bf16.msra.mxu0 0
    %828 = vmatpush.bf16.msra.mxu0 0
    %829 = vmatpush.bf16.msra.mxu0 0
    %830 = vmatpush.bf16.msra.mxu0 0
    %831 = vmatpush.bf16.msra.mxu0 %v816
    %832 = vmatpush.bf16.msra.mxu0 %v814
    %833 = vmatmul.bf16.gmra.mxu0 %v823
    %v834 = vpop.f32.mrf.mxu0
    %v835 = vadd.f32 0.0, %v834
    %v836 = vpop.f32.mrf.mxu0
    %v837 = vadd.f32 0.0, %v836
    %838 = vdwg.mxu0
    %839 = vmatpush.bf16.msra.mxu0 0
    %840 = vmatpush.bf16.msra.mxu0 0
    %841 = vmatpush.bf16.msra.mxu0 0
    %842 = vmatpush.bf16.msra.mxu0 0
    %843 = vmatpush.bf16.msra.mxu0 0
    %844 = vmatpush.bf16.msra.mxu0 0
    %845 = vmatpush.bf16.msra.mxu0 %v817
    %846 = vmatpush.bf16.msra.mxu0 %v815
    %847 = vmatmul.bf16.gmra.mxu0 %v823
    %v848 = vpop.f32.mrf.mxu0
    %v849 = vadd.f32 0.0, %v848
    %v850 = vpop.f32.mrf.mxu0
    %v851 = vadd.f32 0.0, %v850
    %852 = vdwg.mxu0
    %v853 = vxor.u32 %v835, 2147483648
    %v854 = vxor.u32 %v837, 2147483648
    %v855 = vmul.f32 %v853, 1.442695
    %v856 = vpow.pop %v855
    %v857 = vmul.f32 %v854, 1.442695
    %v858 = vpow.pop %v857
    %v859 = vadd.f32 %v856, 1.0
    %v860 = vadd.f32 %v858, 1.0
    %v861 = vrcp.pop %v859
    %v862 = vmul.f32 %v859, %v861
    %v863 = vsub.f32 1.0, %v862
    %v864 = vmul.f32 %v861, %v863
    %v865 = vadd.f32 %v861, %v864
    %vm866 = vweird.f32 %v859
    %vm867 = vweird.f32 %v861
    %vm868 = vmor %vm866, %vm867
    %v869 = vsel %vm868, %v861, %v865
    %v870 = vand.u32 2147483647, %v859
    %vm871 = vcmp.eq.f32.partialorder %v870, 8.507059e+37
    %v872 = vand.u32 %v859, 2147483648
    %v873 = vor.u32 1.1754944e-38, %v872
    %v874 = vsel %vm871, %v873, %v869
    %v875 = vmul.f32 1.0, %v874
    %v876 = vrcp.pop %v860
    %v877 = vmul.f32 %v860, %v876
    %v878 = vsub.f32 1.0, %v877
    %v879 = vmul.f32 %v876, %v878
    %v880 = vadd.f32 %v876, %v879
    %vm881 = vweird.f32 %v860
    %vm882 = vweird.f32 %v876
    %vm883 = vmor %vm881, %vm882
    %v884 = vsel %vm883, %v876, %v880
    %v885 = vand.u32 2147483647, %v860
    %vm886 = vcmp.eq.f32.partialorder %v885, 8.507059e+37
    %v887 = vand.u32 %v860, 2147483648
    %v888 = vor.u32 1.1754944e-38, %v887
    %v889 = vsel %vm886, %v888, %v884
    %v890 = vmul.f32 1.0, %v889
    %v891 = vmul.f32 %v835, %v875
    %v892 = vmul.f32 %v837, %v890
    %v893 = vmul.f32 %v891, %v849
    %v894 = vmul.f32 %v892, %v851
    %v895 = vld [vmem:[%s3 + $0x54] sm:$0xf]
    %v896 = vld [vmem:[%s3 + $0x58] sm:$0xf]
    %v897 = vld [vmem:[%s3 + $0x5c] sm:$0xf]
    %v898 = vld [vmem:[%s3 + $0x60] sm:$0xf]
    %v899 = vld [vmem:[%s3 + $0x64] sm:$0xf]
    %v900 = vld [vmem:[%s3 + $0x68] sm:$0xf]
    %v901 = vld [vmem:[%s3 + $0x6c] sm:$0xf]
    %v902 = vld [vmem:[%s3 + $0x70] sm:$0xf]
    %v903 = vld [vmem:[%s3 + $0x74] sm:$0xf]
    %v904 = vld [vmem:[%s3 + $0x78] sm:$0xf]
    %v905 = vld [vmem:[%s3 + $0x7c] sm:$0xf]
    %v906 = vld [vmem:[%s3 + $0x80] sm:$0xf]
    %v907 = vld [vmem:[%s3 + $0x84] sm:$0xf]
    %v908 = vld [vmem:[%s3 + $0x88] sm:$0xf]
    %v909 = vld [vmem:[%s3 + $0x8c] sm:$0xf]
    %v910 = vld [vmem:[%s3 + $0x90] sm:$0xf]
    %v911 = vpack.c.bf16 %v894, %v893
    %v928 = vunpack.c.l.b16 %v895
    %v929 = vunpack.c.l.b16 %v896
    %v930 = vunpack.c.l.b16 %v897
    %v931 = vunpack.c.l.b16 %v898
    %v932 = vunpack.c.l.b16 %v899
    %v933 = vunpack.c.l.b16 %v900
    %v934 = vunpack.c.l.b16 %v901
    %v935 = vunpack.c.l.b16 %v902
    %v936 = vunpack.c.l.b16 %v903
    %v937 = vunpack.c.l.b16 %v904
    %v938 = vunpack.c.l.b16 %v905
    %v939 = vunpack.c.l.b16 %v906
    %v940 = vunpack.c.l.b16 %v907
    %v941 = vunpack.c.l.b16 %v908
    %v942 = vunpack.c.l.b16 %v909
    %v943 = vunpack.c.l.b16 %v910
    %v944 = vpack.c.b16 %v929, %v928
    %v945 = vpack.c.b16 %v931, %v930
    %v946 = vpack.c.b16 %v933, %v932
    %v947 = vpack.c.b16 %v935, %v934
    %v948 = vpack.c.b16 %v937, %v936
    %v949 = vpack.c.b16 %v939, %v938
    %v950 = vpack.c.b16 %v941, %v940
    %v951 = vpack.c.b16 %v943, %v942
    %960 = vmatpush.bf16.msra.mxu0 %v951
    %961 = vmatpush.bf16.msra.mxu0 %v950
    %962 = vmatpush.bf16.msra.mxu0 %v949
    %963 = vmatpush.bf16.msra.mxu0 %v948
    %964 = vmatpush.bf16.msra.mxu0 %v947
    %965 = vmatpush.bf16.msra.mxu0 %v946
    %966 = vmatpush.bf16.msra.mxu0 %v945
    %967 = vmatpush.bf16.msra.mxu0 %v944
    %968 = vmatmul.bf16.gmra.mxu0 %v911
    %v969 = vpop.f32.mrf.mxu0
    %v970 = vadd.f32 0.0, %v969
    %v971 = vpop.f32.mrf.mxu0
    %v972 = vadd.f32 0.0, %v971
    %973 = vdwg.mxu0
    %v974 = vadd.f32 %v757, %v970
    %v975 = vadd.f32 %v758, %v972
    %v976 = vld [vmem:[%s6 + $0x5] sm:$0x1]
    %v977 = vmul.f32 %v974, %v974
    %v978 = vmul.f32 %v975, %v975
    %v979 = vsel %vm106, %v977, 0.0
    %980 = vadd.xlane.f32.xlu0 %v979
    %v981 = vpop.xlane.xlu0 %980
    %v982 = vsel %vm106, %v978, 0.0
    %983 = vadd.xlane.f32.xlu0 %v982
    %v984 = vpop.xlane.xlu0 %983
    %v985 = vmul.f32 %v981, %v263
    %v986 = vmul.f32 %v984, %v263
    %v987 = vadd.f32 %v985, 1e-06
    %v988 = vadd.f32 %v986, 1e-06
    %v989 = vrsqrt.pop %v987
    %v990 = vmul.f32 %v989, %v987
    %v991 = vmul.f32 %v990, %v989
    %v992 = vmul.f32 0.5, %v991
    %v993 = vsub.f32 1.5, %v992
    %v994 = vmul.f32 %v989, %v993
    %vm995 = vweird.f32 %v987
    %vm996 = vweird.f32 %v989
    %vm997 = vmor %vm995, %vm996
    %v998 = vsel %vm997, %v989, %v994
    %v999 = vrsqrt.pop %v988
    %v1000 = vmul.f32 %v999, %v988
    %v1001 = vmul.f32 %v1000, %v999
    %v1002 = vmul.f32 0.5, %v1001
    %v1003 = vsub.f32 1.5, %v1002
    %v1004 = vmul.f32 %v999, %v1003
    %vm1005 = vweird.f32 %v988
    %vm1006 = vweird.f32 %v999
    %vm1007 = vmor %vm1005, %vm1006
    %v1008 = vsel %vm1007, %v999, %v1004
    %v1009 = vmul.f32 %v974, %v998
    %v1010 = vmul.f32 %v975, %v1008
    %v1011 = vperm.slane %v976, 0
    %v1012 = vmul.f32 %v1009, %v1011
    %v1013 = vmul.f32 %v1010, %v1011
    %v1014 = vld [vmem:[%s4 + $0x10] sm:$0xf]
    %v1015 = vld [vmem:[%s4 + $0x14] sm:$0xf]
    %v1016 = vld [vmem:[%s4 + $0x18] sm:$0xf]
    %v1017 = vld [vmem:[%s4 + $0x1c] sm:$0xf]
    %v1018 = vpack.c.bf16 %v1013, %v1012
    %v1023 = vunpack.c.l.b16 %v1014
    %v1024 = vunpack.c.l.b16 %v1015
    %v1025 = vunpack.c.l.b16 %v1016
    %v1026 = vunpack.c.l.b16 %v1017
    %v1027 = vpack.c.b16 %v1024, %v1023
    %v1028 = vpack.c.b16 %v1026, %v1025
    %v1032 = vsel %vm106, %v1018, 0
    %1034 = vmatpush.bf16.msra.mxu0 0
    %1035 = vmatpush.bf16.msra.mxu0 0
    %1036 = vmatpush.bf16.msra.mxu0 0
    %1037 = vmatpush.bf16.msra.mxu0 0
    %1038 = vmatpush.bf16.msra.mxu0 0
    %1039 = vmatpush.bf16.msra.mxu0 0
    %1040 = vmatpush.bf16.msra.mxu0 %v1028
    %1041 = vmatpush.bf16.msra.mxu0 %v1027
    %1042 = vmatmul.bf16.gmra.mxu0 %v1032
    %v1043 = vpop.f32.mrf.mxu0
    %v1044 = vadd.f32 0.0, %v1043
    %v1045 = vpop.f32.mrf.mxu0
    %v1046 = vadd.f32 0.0, %v1045
    %1047 = vdwg.mxu0
    %v1048 = vmul.f32 %v1044, %v215
    %v1049 = vmul.f32 %v1046, %v216
    %v1050 = vpack.c.bf16 %v1046, %v1044
    %v1052 = vsel %vm106, %v1050, 0
    %1054 = vmatpush.bf16.msra.mxu0 0
    %1055 = vmatpush.bf16.msra.mxu0 0
    %1056 = vmatpush.bf16.msra.mxu0 0
    %1057 = vmatpush.bf16.msra.mxu0 0
    %1058 = vmatpush.bf16.msra.mxu0 0
    %1059 = vmatpush.bf16.msra.mxu0 0
    %1060 = vmatpush.bf16.msra.mxu0 %v339
    %1061 = vmatpush.bf16.msra.mxu0 %v338
    %1062 = vmatmul.bf16.gmra.mxu0 %v1052
    %v1063 = vpop.f32.mrf.mxu0
    %v1064 = vadd.f32 0.0, %v1063
    %v1065 = vpop.f32.mrf.mxu0
    %v1066 = vadd.f32 0.0, %v1065
    %1067 = vdwg.mxu0
    %v1068 = vmul.f32 %v1064, %v217
    %v1069 = vmul.f32 %v1066, %v218
    %v1070 = vadd.f32 %v1048, %v1068
    %v1071 = vadd.f32 %v1049, %v1069
    %v1072 = vmul.f32 %v1070, 0.35355338
    %v1073 = vmul.f32 %v1071, 0.35355338
    %v1074 = vmul.f32 %v1044, %v368
    %v1075 = vmul.f32 %v1046, %v370
    %1077 = vrot.lane.b32.xlu0 %v1050, 96
    %v1078 = vpop.permute.xlu0 %1077
    %v1080 = vsel %vm106, %v1078, 0
    %1082 = vmatpush.bf16.msra.mxu0 0
    %1083 = vmatpush.bf16.msra.mxu0 0
    %1084 = vmatpush.bf16.msra.mxu0 0
    %1085 = vmatpush.bf16.msra.mxu0 0
    %1086 = vmatpush.bf16.msra.mxu0 0
    %1087 = vmatpush.bf16.msra.mxu0 0
    %1088 = vmatpush.bf16.msra.mxu0 %v339
    %1089 = vmatpush.bf16.msra.mxu0 %v338
    %1090 = vmatmul.bf16.gmra.mxu0 %v1080
    %v1091 = vpop.f32.mrf.mxu0
    %v1092 = vadd.f32 0.0, %v1091
    %v1093 = vpop.f32.mrf.mxu0
    %v1094 = vadd.f32 0.0, %v1093
    %1095 = vdwg.mxu0
    %v1096 = vmul.f32 %v1092, %v217
    %v1097 = vmul.f32 %v1094, %v218
    %1100 = vrot.lane.b32.xlu0 %v1096, 32
    %v1101 = vpop.permute.xlu0 %1100
    %1102 = vrot.lane.b32.xlu0 %v1097, 32
    %v1103 = vpop.permute.xlu0 %1102
    %v1106 = vadd.f32 %v1074, %v1101
    %v1107 = vadd.f32 %v1075, %v1103
    %v1108 = vmul.f32 %v1072, %v228
    %v1109 = vmul.f32 %v1073, %v228
    %v1110 = vmul.f32 %v1072, %v232
    %v1111 = vmul.f32 %v1073, %v232
    %v1112 = vmul.f32 %v1072, %v236
    %v1113 = vmul.f32 %v1073, %v236
    %v1114 = vmul.f32 %v1072, %v240
    %v1115 = vmul.f32 %v1073, %v240
    %v1116 = vpack.c.bf16 %v1109, %v1108
    %v1117 = vpack.c.bf16 %v1111, %v1110
    %v1118 = vpack.c.bf16 %v1113, %v1112
    %v1119 = vpack.c.bf16 %v1115, %v1114
    %v1120 = vpack.c.bf16 %v1107, %v1106
    %1122 = vrot.lane.b32.xlu0 %v1120, 96
    %v1123 = vpop.permute.xlu0 %1122
    %v1125 = vsel %vm106, %v1116, 0
    %v1128 = vsel %vm106, %v1117, 0
    %v1131 = vsel %vm106, %v1118, 0
    %v1134 = vsel %vm106, %v1119, 0
    %v1137 = vsel %vm106, %v1123, 0
    %1139 = vmatpush.bf16.xpose.msra.mxu0 0
    %1140 = vmatpush.bf16.xpose.msra.mxu0 0
    %1141 = vmatpush.bf16.xpose.msra.mxu0 0
    %1142 = vmatpush.bf16.xpose.msra.mxu0 0
    %1143 = vmatpush.bf16.xpose.msra.mxu0 0
    %1144 = vmatpush.bf16.xpose.msra.mxu0 0
    %1145 = vmatpush.bf16.xpose.msra.mxu0 0
    %1146 = vmatpush.bf16.xpose.msra.mxu0 %v1137
    %1147 = vmatmul.bf16.gmra.mxu0 %v1125
    %v1148 = vpop.f32.mrf.mxu0
    %v1149 = vadd.f32 %v246, %v1148
    %v1150 = vpop.f32.mrf.mxu0
    %v1151 = vadd.f32 %v247, %v1150
    %1152 = vmatmul.bf16.gmra.mxu0 %v1128
    %v1153 = vpop.f32.mrf.mxu0
    %v1154 = vadd.f32 %v246, %v1153
    %v1155 = vpop.f32.mrf.mxu0
    %v1156 = vadd.f32 %v247, %v1155
    %1157 = vmatmul.bf16.gmra.mxu0 %v1131
    %v1158 = vpop.f32.mrf.mxu0
    %v1159 = vadd.f32 %v246, %v1158
    %v1160 = vpop.f32.mrf.mxu0
    %v1161 = vadd.f32 %v247, %v1160
    %1162 = vmatmul.bf16.gmra.mxu0 %v1134
    %v1163 = vpop.f32.mrf.mxu0
    %v1164 = vadd.f32 %v246, %v1163
    %v1165 = vpop.f32.mrf.mxu0
    %v1166 = vadd.f32 %v247, %v1165
    %1167 = vdwg.mxu0
    %v1168 = vsel %vm71, %v1149, -inf
    %1169 = vmax.xlane.f32.xlu0 %v1168
    %v1170 = vpop.xlane.xlu0 %1169
    %v1171 = vsel %vm71, %v1151, -inf
    %1172 = vmax.xlane.f32.xlu0 %v1171
    %v1173 = vpop.xlane.xlu0 %1172
    %v1174 = vsel %vm71, %v1154, -inf
    %1175 = vmax.xlane.f32.xlu0 %v1174
    %v1176 = vpop.xlane.xlu0 %1175
    %v1177 = vsel %vm71, %v1156, -inf
    %1178 = vmax.xlane.f32.xlu0 %v1177
    %v1179 = vpop.xlane.xlu0 %1178
    %v1180 = vsel %vm71, %v1159, -inf
    %1181 = vmax.xlane.f32.xlu0 %v1180
    %v1182 = vpop.xlane.xlu0 %1181
    %v1183 = vsel %vm71, %v1161, -inf
    %1184 = vmax.xlane.f32.xlu0 %v1183
    %v1185 = vpop.xlane.xlu0 %1184
    %v1186 = vsel %vm71, %v1164, -inf
    %1187 = vmax.xlane.f32.xlu0 %v1186
    %v1188 = vpop.xlane.xlu0 %1187
    %v1189 = vsel %vm71, %v1166, -inf
    %1190 = vmax.xlane.f32.xlu0 %v1189
    %v1191 = vpop.xlane.xlu0 %1190
    %v1192 = vsub.f32 %v1149, %v1170
    %v1193 = vsub.f32 %v1151, %v1173
    %v1194 = vsub.f32 %v1154, %v1176
    %v1195 = vsub.f32 %v1156, %v1179
    %v1196 = vsub.f32 %v1159, %v1182
    %v1197 = vsub.f32 %v1161, %v1185
    %v1198 = vsub.f32 %v1164, %v1188
    %v1199 = vsub.f32 %v1166, %v1191
    %v1200 = vmul.f32 %v1192, 1.442695
    %v1201 = vpow.pop %v1200
    %v1202 = vmul.f32 %v1193, 1.442695
    %v1203 = vpow.pop %v1202
    %v1204 = vmul.f32 %v1194, 1.442695
    %v1205 = vpow.pop %v1204
    %v1206 = vmul.f32 %v1195, 1.442695
    %v1207 = vpow.pop %v1206
    %v1208 = vmul.f32 %v1196, 1.442695
    %v1209 = vpow.pop %v1208
    %v1210 = vmul.f32 %v1197, 1.442695
    %v1211 = vpow.pop %v1210
    %v1212 = vmul.f32 %v1198, 1.442695
    %v1213 = vpow.pop %v1212
    %v1214 = vmul.f32 %v1199, 1.442695
    %v1215 = vpow.pop %v1214
    %v1216 = vsel %vm71, %v1201, 0.0
    %1217 = vadd.xlane.f32.xlu0 %v1216
    %v1218 = vpop.xlane.xlu0 %1217
    %v1219 = vsel %vm71, %v1203, 0.0
    %1220 = vadd.xlane.f32.xlu0 %v1219
    %v1221 = vpop.xlane.xlu0 %1220
    %v1222 = vsel %vm71, %v1205, 0.0
    %1223 = vadd.xlane.f32.xlu0 %v1222
    %v1224 = vpop.xlane.xlu0 %1223
    %v1225 = vsel %vm71, %v1207, 0.0
    %1226 = vadd.xlane.f32.xlu0 %v1225
    %v1227 = vpop.xlane.xlu0 %1226
    %v1228 = vsel %vm71, %v1209, 0.0
    %1229 = vadd.xlane.f32.xlu0 %v1228
    %v1230 = vpop.xlane.xlu0 %1229
    %v1231 = vsel %vm71, %v1211, 0.0
    %1232 = vadd.xlane.f32.xlu0 %v1231
    %v1233 = vpop.xlane.xlu0 %1232
    %v1234 = vsel %vm71, %v1213, 0.0
    %1235 = vadd.xlane.f32.xlu0 %v1234
    %v1236 = vpop.xlane.xlu0 %1235
    %v1237 = vsel %vm71, %v1215, 0.0
    %1238 = vadd.xlane.f32.xlu0 %v1237
    %v1239 = vpop.xlane.xlu0 %1238
    %v1240 = vrcp.pop %v1218
    %v1241 = vmul.f32 %v1218, %v1240
    %v1242 = vsub.f32 1.0, %v1241
    %v1243 = vmul.f32 %v1240, %v1242
    %v1244 = vadd.f32 %v1240, %v1243
    %vm1245 = vweird.f32 %v1218
    %vm1246 = vweird.f32 %v1240
    %vm1247 = vmor %vm1245, %vm1246
    %v1248 = vsel %vm1247, %v1240, %v1244
    %v1249 = vand.u32 2147483647, %v1218
    %vm1250 = vcmp.eq.f32.partialorder %v1249, 8.507059e+37
    %v1251 = vand.u32 %v1218, 2147483648
    %v1252 = vor.u32 1.1754944e-38, %v1251
    %v1253 = vsel %vm1250, %v1252, %v1248
    %v1254 = vmul.f32 %v1201, %v1253
    %v1255 = vrcp.pop %v1221
    %v1256 = vmul.f32 %v1221, %v1255
    %v1257 = vsub.f32 1.0, %v1256
    %v1258 = vmul.f32 %v1255, %v1257
    %v1259 = vadd.f32 %v1255, %v1258
    %vm1260 = vweird.f32 %v1221
    %vm1261 = vweird.f32 %v1255
    %vm1262 = vmor %vm1260, %vm1261
    %v1263 = vsel %vm1262, %v1255, %v1259
    %v1264 = vand.u32 2147483647, %v1221
    %vm1265 = vcmp.eq.f32.partialorder %v1264, 8.507059e+37
    %v1266 = vand.u32 %v1221, 2147483648
    %v1267 = vor.u32 1.1754944e-38, %v1266
    %v1268 = vsel %vm1265, %v1267, %v1263
    %v1269 = vmul.f32 %v1203, %v1268
    %v1270 = vrcp.pop %v1224
    %v1271 = vmul.f32 %v1224, %v1270
    %v1272 = vsub.f32 1.0, %v1271
    %v1273 = vmul.f32 %v1270, %v1272
    %v1274 = vadd.f32 %v1270, %v1273
    %vm1275 = vweird.f32 %v1224
    %vm1276 = vweird.f32 %v1270
    %vm1277 = vmor %vm1275, %vm1276
    %v1278 = vsel %vm1277, %v1270, %v1274
    %v1279 = vand.u32 2147483647, %v1224
    %vm1280 = vcmp.eq.f32.partialorder %v1279, 8.507059e+37
    %v1281 = vand.u32 %v1224, 2147483648
    %v1282 = vor.u32 1.1754944e-38, %v1281
    %v1283 = vsel %vm1280, %v1282, %v1278
    %v1284 = vmul.f32 %v1205, %v1283
    %v1285 = vrcp.pop %v1227
    %v1286 = vmul.f32 %v1227, %v1285
    %v1287 = vsub.f32 1.0, %v1286
    %v1288 = vmul.f32 %v1285, %v1287
    %v1289 = vadd.f32 %v1285, %v1288
    %vm1290 = vweird.f32 %v1227
    %vm1291 = vweird.f32 %v1285
    %vm1292 = vmor %vm1290, %vm1291
    %v1293 = vsel %vm1292, %v1285, %v1289
    %v1294 = vand.u32 2147483647, %v1227
    %vm1295 = vcmp.eq.f32.partialorder %v1294, 8.507059e+37
    %v1296 = vand.u32 %v1227, 2147483648
    %v1297 = vor.u32 1.1754944e-38, %v1296
    %v1298 = vsel %vm1295, %v1297, %v1293
    %v1299 = vmul.f32 %v1207, %v1298
    %v1300 = vrcp.pop %v1230
    %v1301 = vmul.f32 %v1230, %v1300
    %v1302 = vsub.f32 1.0, %v1301
    %v1303 = vmul.f32 %v1300, %v1302
    %v1304 = vadd.f32 %v1300, %v1303
    %vm1305 = vweird.f32 %v1230
    %vm1306 = vweird.f32 %v1300
    %vm1307 = vmor %vm1305, %vm1306
    %v1308 = vsel %vm1307, %v1300, %v1304
    %v1309 = vand.u32 2147483647, %v1230
    %vm1310 = vcmp.eq.f32.partialorder %v1309, 8.507059e+37
    %v1311 = vand.u32 %v1230, 2147483648
    %v1312 = vor.u32 1.1754944e-38, %v1311
    %v1313 = vsel %vm1310, %v1312, %v1308
    %v1314 = vmul.f32 %v1209, %v1313
    %v1315 = vrcp.pop %v1233
    %v1316 = vmul.f32 %v1233, %v1315
    %v1317 = vsub.f32 1.0, %v1316
    %v1318 = vmul.f32 %v1315, %v1317
    %v1319 = vadd.f32 %v1315, %v1318
    %vm1320 = vweird.f32 %v1233
    %vm1321 = vweird.f32 %v1315
    %vm1322 = vmor %vm1320, %vm1321
    %v1323 = vsel %vm1322, %v1315, %v1319
    %v1324 = vand.u32 2147483647, %v1233
    %vm1325 = vcmp.eq.f32.partialorder %v1324, 8.507059e+37
    %v1326 = vand.u32 %v1233, 2147483648
    %v1327 = vor.u32 1.1754944e-38, %v1326
    %v1328 = vsel %vm1325, %v1327, %v1323
    %v1329 = vmul.f32 %v1211, %v1328
    %v1330 = vrcp.pop %v1236
    %v1331 = vmul.f32 %v1236, %v1330
    %v1332 = vsub.f32 1.0, %v1331
    %v1333 = vmul.f32 %v1330, %v1332
    %v1334 = vadd.f32 %v1330, %v1333
    %vm1335 = vweird.f32 %v1236
    %vm1336 = vweird.f32 %v1330
    %vm1337 = vmor %vm1335, %vm1336
    %v1338 = vsel %vm1337, %v1330, %v1334
    %v1339 = vand.u32 2147483647, %v1236
    %vm1340 = vcmp.eq.f32.partialorder %v1339, 8.507059e+37
    %v1341 = vand.u32 %v1236, 2147483648
    %v1342 = vor.u32 1.1754944e-38, %v1341
    %v1343 = vsel %vm1340, %v1342, %v1338
    %v1344 = vmul.f32 %v1213, %v1343
    %v1345 = vrcp.pop %v1239
    %v1346 = vmul.f32 %v1239, %v1345
    %v1347 = vsub.f32 1.0, %v1346
    %v1348 = vmul.f32 %v1345, %v1347
    %v1349 = vadd.f32 %v1345, %v1348
    %vm1350 = vweird.f32 %v1239
    %vm1351 = vweird.f32 %v1345
    %vm1352 = vmor %vm1350, %vm1351
    %v1353 = vsel %vm1352, %v1345, %v1349
    %v1354 = vand.u32 2147483647, %v1239
    %vm1355 = vcmp.eq.f32.partialorder %v1354, 8.507059e+37
    %v1356 = vand.u32 %v1239, 2147483648
    %v1357 = vor.u32 1.1754944e-38, %v1356
    %v1358 = vsel %vm1355, %v1357, %v1353
    %v1359 = vmul.f32 %v1215, %v1358
    %v1360 = vpack.c.bf16 %v1269, %v1254
    %v1361 = vpack.c.bf16 %v1299, %v1284
    %v1362 = vpack.c.bf16 %v1329, %v1314
    %v1363 = vpack.c.bf16 %v1359, %v1344
    %1364 = vrot.lane.b32.xlu0 %v1050, 64
    %v1365 = vpop.permute.xlu0 %1364
    %v1368 = vsel %vm71, %v1360, 0
    %v1371 = vsel %vm71, %v1361, 0
    %v1374 = vsel %vm71, %v1362, 0
    %v1377 = vsel %vm71, %v1363, 0
    %1379 = vmatpush.bf16.msra.mxu0 0
    %1380 = vmatpush.bf16.msra.mxu0 0
    %1381 = vmatpush.bf16.msra.mxu0 0
    %1382 = vmatpush.bf16.msra.mxu0 0
    %1383 = vmatpush.bf16.msra.mxu0 0
    %1384 = vmatpush.bf16.msra.mxu0 0
    %1385 = vmatpush.bf16.msra.mxu0 0
    %1386 = vmatpush.bf16.msra.mxu0 %v1365
    %1387 = vmatmul.bf16.gmra.mxu0 %v1368
    %v1388 = vpop.f32.mrf.mxu0
    %v1389 = vadd.f32 0.0, %v1388
    %v1390 = vpop.f32.mrf.mxu0
    %v1391 = vadd.f32 0.0, %v1390
    %1392 = vmatmul.bf16.gmra.mxu0 %v1371
    %v1393 = vpop.f32.mrf.mxu0
    %v1394 = vadd.f32 0.0, %v1393
    %v1395 = vpop.f32.mrf.mxu0
    %v1396 = vadd.f32 0.0, %v1395
    %1397 = vmatmul.bf16.gmra.mxu0 %v1374
    %v1398 = vpop.f32.mrf.mxu0
    %v1399 = vadd.f32 0.0, %v1398
    %v1400 = vpop.f32.mrf.mxu0
    %v1401 = vadd.f32 0.0, %v1400
    %1402 = vmatmul.bf16.gmra.mxu0 %v1377
    %v1403 = vpop.f32.mrf.mxu0
    %v1404 = vadd.f32 0.0, %v1403
    %v1405 = vpop.f32.mrf.mxu0
    %v1406 = vadd.f32 0.0, %v1405
    %1407 = vdwg.mxu0
    %v1408 = vmul.f32 %v1389, %v228
    %v1409 = vmul.f32 %v1391, %v228
    %v1410 = vadd.f32 %v1408, 0.0
    %v1411 = vadd.f32 %v1409, 0.0
    %v1412 = vmul.f32 %v1394, %v232
    %v1413 = vmul.f32 %v1396, %v232
    %v1414 = vadd.f32 %v1410, %v1412
    %v1415 = vadd.f32 %v1411, %v1413
    %v1416 = vmul.f32 %v1399, %v236
    %v1417 = vmul.f32 %v1401, %v236
    %v1418 = vadd.f32 %v1414, %v1416
    %v1419 = vadd.f32 %v1415, %v1417
    %v1420 = vmul.f32 %v1404, %v240
    %v1421 = vmul.f32 %v1406, %v240
    %v1422 = vadd.f32 %v1418, %v1420
    %v1423 = vadd.f32 %v1419, %v1421
    %v1424 = vld [vmem:[%s3 + $0x94] sm:$0xf]
    %v1425 = vld [vmem:[%s3 + $0x98] sm:$0xf]
    %v1426 = vld [vmem:[%s3 + $0x9c] sm:$0xf]
    %v1427 = vld [vmem:[%s3 + $0xa0] sm:$0xf]
    %v1428 = vpack.c.bf16 %v1423, %v1422
    %v1433 = vunpack.c.l.b16 %v1424
    %v1434 = vunpack.c.l.b16 %v1425
    %v1435 = vunpack.c.l.b16 %v1426
    %v1436 = vunpack.c.l.b16 %v1427
    %v1437 = vpack.c.b16 %v1434, %v1433
    %v1438 = vpack.c.b16 %v1436, %v1435
    %v1442 = vsel %vm106, %v1428, 0
    %1444 = vmatpush.bf16.msra.mxu0 0
    %1445 = vmatpush.bf16.msra.mxu0 0
    %1446 = vmatpush.bf16.msra.mxu0 0
    %1447 = vmatpush.bf16.msra.mxu0 0
    %1448 = vmatpush.bf16.msra.mxu0 0
    %1449 = vmatpush.bf16.msra.mxu0 0
    %1450 = vmatpush.bf16.msra.mxu0 %v1438
    %1451 = vmatpush.bf16.msra.mxu0 %v1437
    %1452 = vmatmul.bf16.gmra.mxu0 %v1442
    %v1453 = vpop.f32.mrf.mxu0
    %v1454 = vadd.f32 0.0, %v1453
    %v1455 = vpop.f32.mrf.mxu0
    %v1456 = vadd.f32 0.0, %v1455
    %1457 = vdwg.mxu0
    %v1458 = vadd.f32 %v974, %v1454
    %v1459 = vadd.f32 %v975, %v1456
    %v1460 = vld [vmem:[%s6 + $0x6] sm:$0x1]
    %v1461 = vmul.f32 %v1458, %v1458
    %v1462 = vmul.f32 %v1459, %v1459
    %v1463 = vsel %vm106, %v1461, 0.0
    %1464 = vadd.xlane.f32.xlu0 %v1463
    %v1465 = vpop.xlane.xlu0 %1464
    %v1466 = vsel %vm106, %v1462, 0.0
    %1467 = vadd.xlane.f32.xlu0 %v1466
    %v1468 = vpop.xlane.xlu0 %1467
    %v1469 = vmul.f32 %v1465, %v263
    %v1470 = vmul.f32 %v1468, %v263
    %v1471 = vadd.f32 %v1469, 1e-06
    %v1472 = vadd.f32 %v1470, 1e-06
    %v1473 = vrsqrt.pop %v1471
    %v1474 = vmul.f32 %v1473, %v1471
    %v1475 = vmul.f32 %v1474, %v1473
    %v1476 = vmul.f32 0.5, %v1475
    %v1477 = vsub.f32 1.5, %v1476
    %v1478 = vmul.f32 %v1473, %v1477
    %vm1479 = vweird.f32 %v1471
    %vm1480 = vweird.f32 %v1473
    %vm1481 = vmor %vm1479, %vm1480
    %v1482 = vsel %vm1481, %v1473, %v1478
    %v1483 = vrsqrt.pop %v1472
    %v1484 = vmul.f32 %v1483, %v1472
    %v1485 = vmul.f32 %v1484, %v1483
    %v1486 = vmul.f32 0.5, %v1485
    %v1487 = vsub.f32 1.5, %v1486
    %v1488 = vmul.f32 %v1483, %v1487
    %vm1489 = vweird.f32 %v1472
    %vm1490 = vweird.f32 %v1483
    %vm1491 = vmor %vm1489, %vm1490
    %v1492 = vsel %vm1491, %v1483, %v1488
    %v1493 = vmul.f32 %v1458, %v1482
    %v1494 = vmul.f32 %v1459, %v1492
    %v1495 = vperm.slane %v1460, 0
    %v1496 = vmul.f32 %v1493, %v1495
    %v1497 = vmul.f32 %v1494, %v1495
    %v1498 = vld [vmem:[%s5 + $0x20] sm:$0xff]
    %v1499 = vld [vmem:[%s5 + $0x28] sm:$0xff]
    %v1500 = vld [vmem:[%s5 + $0x30] sm:$0xff]
    %v1501 = vld [vmem:[%s5 + $0x38] sm:$0xff]
    %v1502 = vpack.c.bf16 %v1497, %v1496
    %v1507 = vunpack.c.l.b16 %v1498
    %v1508 = vunpack.c.h.b16 %v1498
    %v1509 = vunpack.c.l.b16 %v1499
    %v1510 = vunpack.c.h.b16 %v1499
    %v1511 = vunpack.c.l.b16 %v1500
    %v1512 = vunpack.c.h.b16 %v1500
    %v1513 = vunpack.c.l.b16 %v1501
    %v1514 = vunpack.c.h.b16 %v1501
    %v1515 = vpack.c.b16 %v1509, %v1507
    %v1516 = vpack.c.b16 %v1510, %v1508
    %v1517 = vpack.c.b16 %v1513, %v1511
    %v1518 = vpack.c.b16 %v1514, %v1512
    %v1524 = vsel %vm106, %v1502, 0
    %1526 = vmatpush.bf16.msra.mxu0 0
    %1527 = vmatpush.bf16.msra.mxu0 0
    %1528 = vmatpush.bf16.msra.mxu0 0
    %1529 = vmatpush.bf16.msra.mxu0 0
    %1530 = vmatpush.bf16.msra.mxu0 0
    %1531 = vmatpush.bf16.msra.mxu0 0
    %1532 = vmatpush.bf16.msra.mxu0 %v1517
    %1533 = vmatpush.bf16.msra.mxu0 %v1515
    %1534 = vmatmul.bf16.gmra.mxu0 %v1524
    %v1535 = vpop.f32.mrf.mxu0
    %v1536 = vadd.f32 0.0, %v1535
    %v1537 = vpop.f32.mrf.mxu0
    %v1538 = vadd.f32 0.0, %v1537
    %1539 = vdwg.mxu0
    %1540 = vmatpush.bf16.msra.mxu0 0
    %1541 = vmatpush.bf16.msra.mxu0 0
    %1542 = vmatpush.bf16.msra.mxu0 0
    %1543 = vmatpush.bf16.msra.mxu0 0
    %1544 = vmatpush.bf16.msra.mxu0 0
    %1545 = vmatpush.bf16.msra.mxu0 0
    %1546 = vmatpush.bf16.msra.mxu0 %v1518
    %1547 = vmatpush.bf16.msra.mxu0 %v1516
    %1548 = vmatmul.bf16.gmra.mxu0 %v1524
    %v1549 = vpop.f32.mrf.mxu0
    %v1550 = vadd.f32 0.0, %v1549
    %v1551 = vpop.f32.mrf.mxu0
    %v1552 = vadd.f32 0.0, %v1551
    %1553 = vdwg.mxu0
    %v1554 = vxor.u32 %v1536, 2147483648
    %v1555 = vxor.u32 %v1538, 2147483648
    %v1556 = vmul.f32 %v1554, 1.442695
    %v1557 = vpow.pop %v1556
    %v1558 = vmul.f32 %v1555, 1.442695
    %v1559 = vpow.pop %v1558
    %v1560 = vadd.f32 %v1557, 1.0
    %v1561 = vadd.f32 %v1559, 1.0
    %v1562 = vrcp.pop %v1560
    %v1563 = vmul.f32 %v1560, %v1562
    %v1564 = vsub.f32 1.0, %v1563
    %v1565 = vmul.f32 %v1562, %v1564
    %v1566 = vadd.f32 %v1562, %v1565
    %vm1567 = vweird.f32 %v1560
    %vm1568 = vweird.f32 %v1562
    %vm1569 = vmor %vm1567, %vm1568
    %v1570 = vsel %vm1569, %v1562, %v1566
    %v1571 = vand.u32 2147483647, %v1560
    %vm1572 = vcmp.eq.f32.partialorder %v1571, 8.507059e+37
    %v1573 = vand.u32 %v1560, 2147483648
    %v1574 = vor.u32 1.1754944e-38, %v1573
    %v1575 = vsel %vm1572, %v1574, %v1570
    %v1576 = vmul.f32 1.0, %v1575
    %v1577 = vrcp.pop %v1561
    %v1578 = vmul.f32 %v1561, %v1577
    %v1579 = vsub.f32 1.0, %v1578
    %v1580 = vmul.f32 %v1577, %v1579
    %v1581 = vadd.f32 %v1577, %v1580
    %vm1582 = vweird.f32 %v1561
    %vm1583 = vweird.f32 %v1577
    %vm1584 = vmor %vm1582, %vm1583
    %v1585 = vsel %vm1584, %v1577, %v1581
    %v1586 = vand.u32 2147483647, %v1561
    %vm1587 = vcmp.eq.f32.partialorder %v1586, 8.507059e+37
    %v1588 = vand.u32 %v1561, 2147483648
    %v1589 = vor.u32 1.1754944e-38, %v1588
    %v1590 = vsel %vm1587, %v1589, %v1585
    %v1591 = vmul.f32 1.0, %v1590
    %v1592 = vmul.f32 %v1536, %v1576
    %v1593 = vmul.f32 %v1538, %v1591
    %v1594 = vmul.f32 %v1592, %v1550
    %v1595 = vmul.f32 %v1593, %v1552
    %v1596 = vld [vmem:[%s3 + $0xa4] sm:$0xf]
    %v1597 = vld [vmem:[%s3 + $0xa8] sm:$0xf]
    %v1598 = vld [vmem:[%s3 + $0xac] sm:$0xf]
    %v1599 = vld [vmem:[%s3 + $0xb0] sm:$0xf]
    %v1600 = vld [vmem:[%s3 + $0xb4] sm:$0xf]
    %v1601 = vld [vmem:[%s3 + $0xb8] sm:$0xf]
    %v1602 = vld [vmem:[%s3 + $0xbc] sm:$0xf]
    %v1603 = vld [vmem:[%s3 + $0xc0] sm:$0xf]
    %v1604 = vld [vmem:[%s3 + $0xc4] sm:$0xf]
    %v1605 = vld [vmem:[%s3 + $0xc8] sm:$0xf]
    %v1606 = vld [vmem:[%s3 + $0xcc] sm:$0xf]
    %v1607 = vld [vmem:[%s3 + $0xd0] sm:$0xf]
    %v1608 = vld [vmem:[%s3 + $0xd4] sm:$0xf]
    %v1609 = vld [vmem:[%s3 + $0xd8] sm:$0xf]
    %v1610 = vld [vmem:[%s3 + $0xdc] sm:$0xf]
    %v1611 = vld [vmem:[%s3 + $0xe0] sm:$0xf]
    %v1612 = vpack.c.bf16 %v1595, %v1594
    %v1629 = vunpack.c.l.b16 %v1596
    %v1630 = vunpack.c.l.b16 %v1597
    %v1631 = vunpack.c.l.b16 %v1598
    %v1632 = vunpack.c.l.b16 %v1599
    %v1633 = vunpack.c.l.b16 %v1600
    %v1634 = vunpack.c.l.b16 %v1601
    %v1635 = vunpack.c.l.b16 %v1602
    %v1636 = vunpack.c.l.b16 %v1603
    %v1637 = vunpack.c.l.b16 %v1604
    %v1638 = vunpack.c.l.b16 %v1605
    %v1639 = vunpack.c.l.b16 %v1606
    %v1640 = vunpack.c.l.b16 %v1607
    %v1641 = vunpack.c.l.b16 %v1608
    %v1642 = vunpack.c.l.b16 %v1609
    %v1643 = vunpack.c.l.b16 %v1610
    %v1644 = vunpack.c.l.b16 %v1611
    %v1645 = vpack.c.b16 %v1630, %v1629
    %v1646 = vpack.c.b16 %v1632, %v1631
    %v1647 = vpack.c.b16 %v1634, %v1633
    %v1648 = vpack.c.b16 %v1636, %v1635
    %v1649 = vpack.c.b16 %v1638, %v1637
    %v1650 = vpack.c.b16 %v1640, %v1639
    %v1651 = vpack.c.b16 %v1642, %v1641
    %v1652 = vpack.c.b16 %v1644, %v1643
    %1661 = vmatpush.bf16.msra.mxu0 %v1652
    %1662 = vmatpush.bf16.msra.mxu0 %v1651
    %1663 = vmatpush.bf16.msra.mxu0 %v1650
    %1664 = vmatpush.bf16.msra.mxu0 %v1649
    %1665 = vmatpush.bf16.msra.mxu0 %v1648
    %1666 = vmatpush.bf16.msra.mxu0 %v1647
    %1667 = vmatpush.bf16.msra.mxu0 %v1646
    %1668 = vmatpush.bf16.msra.mxu0 %v1645
    %1669 = vmatmul.bf16.gmra.mxu0 %v1612
    %v1670 = vpop.f32.mrf.mxu0
    %v1671 = vadd.f32 0.0, %v1670
    %v1672 = vpop.f32.mrf.mxu0
    %v1673 = vadd.f32 0.0, %v1672
    %1674 = vdwg.mxu0
    %v1675 = vadd.f32 %v1458, %v1671
    %v1676 = vadd.f32 %v1459, %v1673
    %v1677 = vld [vmem:[%s6 + $0x7] sm:$0x1]
    %v1678 = vmul.f32 %v1675, %v1675
    %v1679 = vmul.f32 %v1676, %v1676
    %v1680 = vsel %vm106, %v1678, 0.0
    %1681 = vadd.xlane.f32.xlu0 %v1680
    %v1682 = vpop.xlane.xlu0 %1681
    %v1683 = vsel %vm106, %v1679, 0.0
    %1684 = vadd.xlane.f32.xlu0 %v1683
    %v1685 = vpop.xlane.xlu0 %1684
    %v1686 = vmul.f32 %v1682, %v263
    %v1687 = vmul.f32 %v1685, %v263
    %v1688 = vadd.f32 %v1686, 1e-06
    %v1689 = vadd.f32 %v1687, 1e-06
    %v1690 = vrsqrt.pop %v1688
    %v1691 = vmul.f32 %v1690, %v1688
    %v1692 = vmul.f32 %v1691, %v1690
    %v1693 = vmul.f32 0.5, %v1692
    %v1694 = vsub.f32 1.5, %v1693
    %v1695 = vmul.f32 %v1690, %v1694
    %vm1696 = vweird.f32 %v1688
    %vm1697 = vweird.f32 %v1690
    %vm1698 = vmor %vm1696, %vm1697
    %v1699 = vsel %vm1698, %v1690, %v1695
    %v1700 = vrsqrt.pop %v1689
    %v1701 = vmul.f32 %v1700, %v1689
    %v1702 = vmul.f32 %v1701, %v1700
    %v1703 = vmul.f32 0.5, %v1702
    %v1704 = vsub.f32 1.5, %v1703
    %v1705 = vmul.f32 %v1700, %v1704
    %vm1706 = vweird.f32 %v1689
    %vm1707 = vweird.f32 %v1700
    %vm1708 = vmor %vm1706, %vm1707
    %v1709 = vsel %vm1708, %v1700, %v1705
    %v1710 = vmul.f32 %v1675, %v1699
    %v1711 = vmul.f32 %v1676, %v1709
    %v1712 = vperm.slane %v1677, 0
    %v1713 = vmul.f32 %v1710, %v1712
    %v1714 = vmul.f32 %v1711, %v1712
    %v1715 = vld [vmem:[%s3 + $0xe4] sm:$0xf]
    %v1716 = vld [vmem:[%s3 + $0xe8] sm:$0xf]
    %v1717 = vld [vmem:[%s3 + $0xec] sm:$0xf]
    %v1718 = vld [vmem:[%s3 + $0xf0] sm:$0xf]
    %v1719 = vpack.c.bf16 %v214, %v213
    %v1720 = vld [vmem:[%s3 + $0xf4] sm:$0xf]
    %v1721 = vld [vmem:[%s3 + $0xf8] sm:$0xf]
    %v1722 = vld [vmem:[%s3 + $0xfc] sm:$0xf]
    %v1723 = vld [vmem:[%s3 + $0x100] sm:$0xf]
    %v1724 = vpack.c.bf16 %v1714, %v1713
    %v1729 = vunpack.c.l.b16 %v1720
    %v1730 = vunpack.c.l.b16 %v1721
    %v1731 = vunpack.c.l.b16 %v1722
    %v1732 = vunpack.c.l.b16 %v1723
    %v1733 = vpack.c.b16 %v1730, %v1729
    %v1734 = vpack.c.b16 %v1732, %v1731
    %v1738 = vsel %vm106, %v1724, 0
    %1740 = vmatpush.bf16.msra.mxu0 0
    %1741 = vmatpush.bf16.msra.mxu0 0
    %1742 = vmatpush.bf16.msra.mxu0 0
    %1743 = vmatpush.bf16.msra.mxu0 0
    %1744 = vmatpush.bf16.msra.mxu0 0
    %1745 = vmatpush.bf16.msra.mxu0 0
    %1746 = vmatpush.bf16.msra.mxu0 %v1734
    %1747 = vmatpush.bf16.msra.mxu0 %v1733
    %1748 = vmatmul.bf16.gmra.mxu0 %v1738
    %v1749 = vpop.f32.mrf.mxu0
    %v1750 = vadd.f32 0.0, %v1749
    %v1751 = vpop.f32.mrf.mxu0
    %v1752 = vadd.f32 0.0, %v1751
    %1753 = vdwg.mxu0
    %v1758 = vunpack.c.l.b16 %v1715
    %v1759 = vunpack.c.l.b16 %v1716
    %v1760 = vunpack.c.l.b16 %v1717
    %v1761 = vunpack.c.l.b16 %v1718
    %v1762 = vpack.c.b16 %v1759, %v1758
    %v1763 = vpack.c.b16 %v1761, %v1760
    %v1767 = vsel %vm106, %v1719, 0
    %1769 = vmatpush.bf16.msra.mxu0 0
    %1770 = vmatpush.bf16.msra.mxu0 0
    %1771 = vmatpush.bf16.msra.mxu0 0
    %1772 = vmatpush.bf16.msra.mxu0 0
    %1773 = vmatpush.bf16.msra.mxu0 0
    %1774 = vmatpush.bf16.msra.mxu0 0
    %1775 = vmatpush.bf16.msra.mxu0 %v1763
    %1776 = vmatpush.bf16.msra.mxu0 %v1762
    %1777 = vmatmul.bf16.gmra.mxu0 %v1767
    %v1778 = vpop.f32.mrf.mxu0
    %v1779 = vadd.f32 %v1750, %v1778
    %v1780 = vpop.f32.mrf.mxu0
    %v1781 = vadd.f32 %v1752, %v1780
    %1782 = vdwg.mxu0
    %v1783 = vld [vmem:[%s6 + $0x8] sm:$0x1]
    %v1784 = vperm.slane %v1783, 0
    %v1785 = vadd.f32 %v1779, %v1784
    %v1786 = vadd.f32 %v1781, %v1784
    %1787 = vst.msk [vmem:[#allocation4] sm:$0xff] %vm106, %v1785
    %1788 = vst.msk [vmem:[#allocation4 + $0x8] sm:$0xff] %vm106, %v1786
    %v1789 = vpack.c.bf16 %v1786, %v1785
    %v1790 = vld [vmem:[%s2] sm:$0xff]
    %v1791 = vld [vmem:[%s2 + $0x8] sm:$0xff]
    %v1792 = vld [vmem:[%s2 + $0x10] sm:$0xff]
    %1793 = vset.pattern.permute.xlu0 0
    %1794 = vperm.xlu0 %1793, %v1790
    %v1795 = vpop.permute.xlu0 %1794
    %1796 = vset.pattern.permute.xlu0 0
    %1797 = vperm.xlu0 %1796, %v1791
    %v1798 = vpop.permute.xlu0 %1797
    %1799 = vset.pattern.permute.xlu0 0
    %1800 = vperm.xlu0 %1799, %v1792
    %v1801 = vpop.permute.xlu0 %1800
    %vm1802 = vcmp.eq.s32.totalorder %v224, %v1795
    %vm1803 = vcmp.eq.s32.totalorder %v224, %v1798
    %vm1804 = vcmp.eq.s32.totalorder %v224, %v1801
    %v1805 = vsel %vm1802, 1.0, 0.0
    %v1806 = vsel %vm1803, 1.0, 0.0
    %v1807 = vsel %vm1804, 1.0, 0.0
    %v1808 = vpack.c.bf16 %v1806, %v1805
    %v1809 = vpack.c.bf16 %v1807, %v1807
    %1810 = vset.pattern.permute.xlu0 1
    %1811 = vperm.xlu0 %1810, %v1790
    %v1812 = vpop.permute.xlu0 %1811
    %1813 = vset.pattern.permute.xlu0 1
    %1814 = vperm.xlu0 %1813, %v1791
    %v1815 = vpop.permute.xlu0 %1814
    %1816 = vset.pattern.permute.xlu0 1
    %1817 = vperm.xlu0 %1816, %v1792
    %v1818 = vpop.permute.xlu0 %1817
    %vm1819 = vcmp.eq.s32.totalorder %v224, %v1812
    %vm1820 = vcmp.eq.s32.totalorder %v224, %v1815
    %vm1821 = vcmp.eq.s32.totalorder %v224, %v1818
    %v1822 = vsel %vm1819, 1.0, 0.0
    %v1823 = vsel %vm1820, 1.0, 0.0
    %v1824 = vsel %vm1821, 1.0, 0.0
    %v1825 = vpack.c.bf16 %v1823, %v1822
    %v1826 = vpack.c.bf16 %v1824, %v1824
    %v1828 = vsel %vm71, %v1808, 0
    %v1831 = vsel %vm71, %v1809, 0
    %1833 = vmatpush.bf16.msra.mxu0 0
    %1834 = vmatpush.bf16.msra.mxu0 0
    %1835 = vmatpush.bf16.msra.mxu0 0
    %1836 = vmatpush.bf16.msra.mxu0 0
    %1837 = vmatpush.bf16.msra.mxu0 0
    %1838 = vmatpush.bf16.msra.mxu0 0
    %1839 = vmatpush.bf16.msra.mxu0 0
    %1840 = vmatpush.bf16.msra.mxu0 %v1789
    %1841 = vmatmul.bf16.gmra.mxu0 %v1828
    %v1842 = vpop.f32.mrf.mxu0
    %v1843 = vadd.f32 0.0, %v1842
    %v1844 = vpop.f32.mrf.mxu0
    %v1845 = vadd.f32 0.0, %v1844
    %1846 = vmatmul.bf16.gmra.mxu0 %v1831
    %v1847 = vpop.f32.mrf.mxu0
    %v1848 = vadd.f32 0.0, %v1847
    %v1849 = vpop.f32.mrf.mxu0
    %1850 = vdwg.mxu0
    %v1852 = vsel %vm71, %v1825, 0
    %v1855 = vsel %vm71, %v1826, 0
    %1857 = vmatpush.bf16.msra.mxu0 0
    %1858 = vmatpush.bf16.msra.mxu0 0
    %1859 = vmatpush.bf16.msra.mxu0 0
    %1860 = vmatpush.bf16.msra.mxu0 0
    %1861 = vmatpush.bf16.msra.mxu0 0
    %1862 = vmatpush.bf16.msra.mxu0 0
    %1863 = vmatpush.bf16.msra.mxu0 0
    %1864 = vmatpush.bf16.msra.mxu0 %v1789
    %1865 = vmatmul.bf16.gmra.mxu0 %v1852
    %v1866 = vpop.f32.mrf.mxu0
    %v1867 = vadd.f32 0.0, %v1866
    %v1868 = vpop.f32.mrf.mxu0
    %v1869 = vadd.f32 0.0, %v1868
    %1870 = vmatmul.bf16.gmra.mxu0 %v1855
    %v1871 = vpop.f32.mrf.mxu0
    %v1872 = vadd.f32 0.0, %v1871
    %v1873 = vpop.f32.mrf.mxu0
    %1874 = vdwg.mxu0
    %v1875 = vld [vmem:[%s3 + $0x104] sm:$0xf]
    %v1876 = vld [vmem:[%s3 + $0x108] sm:$0xf]
    %v1877 = vld [vmem:[%s3 + $0x10c] sm:$0xf]
    %v1878 = vld [vmem:[%s3 + $0x110] sm:$0xf]
    %v1879 = vpack.c.bf16 %v1845, %v1843
    %v1880 = vpack.c.bf16 %v1848, %v1848
    %v1881 = vld [vmem:[%s3 + $0x114] sm:$0xf]
    %v1882 = vld [vmem:[%s3 + $0x118] sm:$0xf]
    %v1883 = vld [vmem:[%s3 + $0x11c] sm:$0xf]
    %v1884 = vld [vmem:[%s3 + $0x120] sm:$0xf]
    %v1885 = vpack.c.bf16 %v1869, %v1867
    %v1886 = vpack.c.bf16 %v1872, %v1872
    %v1891 = vunpack.c.l.b16 %v1881
    %v1892 = vunpack.c.l.b16 %v1882
    %v1893 = vunpack.c.l.b16 %v1883
    %v1894 = vunpack.c.l.b16 %v1884
    %v1895 = vpack.c.b16 %v1892, %v1891
    %v1896 = vpack.c.b16 %v1894, %v1893
    %v1900 = vsel %vm106, %v1885, 0
    %v1903 = vsel %vm106, %v1886, 0
    %1905 = vmatpush.bf16.msra.mxu0 0
    %1906 = vmatpush.bf16.msra.mxu0 0
    %1907 = vmatpush.bf16.msra.mxu0 0
    %1908 = vmatpush.bf16.msra.mxu0 0
    %1909 = vmatpush.bf16.msra.mxu0 0
    %1910 = vmatpush.bf16.msra.mxu0 0
    %1911 = vmatpush.bf16.msra.mxu0 %v1896
    %1912 = vmatpush.bf16.msra.mxu0 %v1895
    %1913 = vmatmul.bf16.gmra.mxu0 %v1900
    %v1914 = vpop.f32.mrf.mxu0
    %v1915 = vadd.f32 0.0, %v1914
    %v1916 = vpop.f32.mrf.mxu0
    %v1917 = vadd.f32 0.0, %v1916
    %1918 = vmatmul.bf16.gmra.mxu0 %v1903
    %v1919 = vpop.f32.mrf.mxu0
    %v1920 = vadd.f32 0.0, %v1919
    %v1921 = vpop.f32.mrf.mxu0
    %1922 = vdwg.mxu0
    %v1927 = vunpack.c.l.b16 %v1875
    %v1928 = vunpack.c.l.b16 %v1876
    %v1929 = vunpack.c.l.b16 %v1877
    %v1930 = vunpack.c.l.b16 %v1878
    %v1931 = vpack.c.b16 %v1928, %v1927
    %v1932 = vpack.c.b16 %v1930, %v1929
    %v1936 = vsel %vm106, %v1879, 0
    %v1939 = vsel %vm106, %v1880, 0
    %1941 = vmatpush.bf16.msra.mxu0 0
    %1942 = vmatpush.bf16.msra.mxu0 0
    %1943 = vmatpush.bf16.msra.mxu0 0
    %1944 = vmatpush.bf16.msra.mxu0 0
    %1945 = vmatpush.bf16.msra.mxu0 0
    %1946 = vmatpush.bf16.msra.mxu0 0
    %1947 = vmatpush.bf16.msra.mxu0 %v1932
    %1948 = vmatpush.bf16.msra.mxu0 %v1931
    %1949 = vmatmul.bf16.gmra.mxu0 %v1936
    %v1950 = vpop.f32.mrf.mxu0
    %v1951 = vadd.f32 %v1915, %v1950
    %v1952 = vpop.f32.mrf.mxu0
    %v1953 = vadd.f32 %v1917, %v1952
    %1954 = vmatmul.bf16.gmra.mxu0 %v1939
    %v1955 = vpop.f32.mrf.mxu0
    %v1956 = vadd.f32 %v1920, %v1955
    %v1957 = vpop.f32.mrf.mxu0
    %1958 = vdwg.mxu0
    %v1959 = vld [vmem:[%s6 + $0x9] sm:$0x1]
    %v1960 = vperm.slane %v1959, 0
    %v1961 = vadd.f32 %v1951, %v1960
    %v1962 = vadd.f32 %v1953, %v1960
    %v1963 = vadd.f32 %v1956, %v1960
    %v1964 = vmax.f32 %v1961, 0.0
    %v1965 = vmax.f32 %v1962, 0.0
    %v1966 = vmax.f32 %v1963, 0.0
    %v1967 = vld [vmem:[%s6 + $0xa] sm:$0x1]
    %v1968 = vpack.c.bf16 %v1967, %v1967
    %v1969 = vpack.c.bf16 %v1965, %v1964
    %v1970 = vpack.c.bf16 %v1966, %v1966
    %v1971 = vld [vmem:[%s6 + $0xb] sm:$0x1]
    %1973 = vset.pattern.permute.xlu0 0
    %1974 = vperm.xlu0 %1973, %v1971
    %v1975 = vpop.permute.xlu0 %1974
    %v1978 = vsel %vm106, %v1968, 0
    %v1981 = vsel %vm106, %v1969, 0
    %v1984 = vsel %vm106, %v1970, 0
    %1986 = vmatpush.bf16.xpose.msra.mxu0 0
    %1987 = vmatpush.bf16.xpose.msra.mxu0 0
    %1988 = vmatpush.bf16.xpose.msra.mxu0 0
    %1989 = vmatpush.bf16.xpose.msra.mxu0 0
    %1990 = vmatpush.bf16.xpose.msra.mxu0 0
    %1991 = vmatpush.bf16.xpose.msra.mxu0 0
    %1992 = vmatpush.bf16.xpose.msra.mxu0 %v1984
    %1993 = vmatpush.bf16.xpose.msra.mxu0 %v1981
    %1994 = vmatmul.bf16.gmra.mxu0 %v1978
    %v1995 = vpop.f32.mrf.mxu0
    %v1996 = vadd.f32 %v1975, %v1995
    %v1997 = vpop.f32.mrf.mxu0
    %1998 = vdwg.mxu0
    %v1999 = vxor.u32 %v1996, 2147483648
    %v2000 = vmul.f32 %v1999, 1.442695
    %v2001 = vpow.pop %v2000
    %v2002 = vadd.f32 %v2001, 1.0
    %v2003 = vrcp.pop %v2002
    %v2004 = vmul.f32 %v2002, %v2003
    %v2005 = vsub.f32 1.0, %v2004
    %v2006 = vmul.f32 %v2003, %v2005
    %v2007 = vadd.f32 %v2003, %v2006
    %vm2008 = vweird.f32 %v2002
    %vm2009 = vweird.f32 %v2003
    %vm2010 = vmor %vm2008, %vm2009
    %v2011 = vsel %vm2010, %v2003, %v2007
    %v2012 = vand.u32 2147483647, %v2002
    %vm2013 = vcmp.eq.f32.partialorder %v2012, 8.507059e+37
    %v2014 = vand.u32 %v2002, 2147483648
    %v2015 = vor.u32 1.1754944e-38, %v2014
    %v2016 = vsel %vm2013, %v2015, %v2011
    %v2017 = vmul.f32 1.0, %v2016
    %vm2018 = vcmask 188416
    %2019 = vst.msk [vmem:[#allocation2] sm:$0x1] %vm2018, %v2017
    // Predicated region
    $region30: #{etgn_forward.1} parent=1 // pred_check
      _
    $region31: #{etgn_forward.1} parent=1 // pred_check_branch
      %2021 = sbr.rel (0) target = $region33
    $region32: #{etgn_forward.1} parent=1 // pred_region
      %2023 = vsyncadd [#allocation3], 0
      %s2025 = sshll.u32 [#allocation2], 4
      %s2026 = int_to_ptr.vmem [resolvable:$true] %s2025
      %s2027 = sshll.u32 %s7, 4
      %s2028 = int_to_ptr.hbm [resolvable:$true] %s2027
      %2030 = dma.vmem_to_hbm [thread:$0]  %s2026, 16, %s2028, [#allocation3]
    $region33: #{etgn_forward.1} parent=1 // pred_fallthru
      _
    // Predicated region
    $region34: #{etgn_forward.1} parent=1 // pred_check
      _
    $region35: #{etgn_forward.1} parent=1 // pred_check_branch
      %2032 = sbr.rel (0) target = $region37
    $region36: #{etgn_forward.1} parent=1 // pred_region
      %2034 = vsyncadd [#allocation5], 0
      %s2035 = sshll.u32 [#allocation4], 4
      %s2036 = int_to_ptr.vmem [resolvable:$true] %s2035
      %s2037 = sshll.u32 %s8, 4
      %s2038 = int_to_ptr.hbm [resolvable:$true] %s2037
      %2043 = dma.vmem_to_hbm [thread:$0]  %s2036, 256, %s2038, [#allocation5], 128, 128, 8
    $region37: #{etgn_forward.1} parent=1 // pred_fallthru
      _
    // Predicated region
    $region38: #{etgn_forward.1} parent=1 // pred_check
      _
    $region39: #{etgn_forward.1} parent=1 // pred_check_branch
      %2045 = sbr.rel (0) target = $region41
    $region40: #{etgn_forward.1} parent=1 // pred_region
      %2047 = dma.done [#allocation3], 16
    $region41: #{etgn_forward.1} parent=1 // pred_fallthru
      _
    // Predicated region
    $region42: #{etgn_forward.1} parent=1 // pred_check
      _
    $region43: #{etgn_forward.1} parent=1 // pred_check_branch
      %2049 = sbr.rel (0) target = $region45
    $region44: #{etgn_forward.1} parent=1 // pred_region
      %2051 = dma.done [#allocation5], 256
    $region45: #{etgn_forward.1} parent=1 // pred_fallthru
      _
    %2052 = vsyncpa [#allocation3], 1
    %2053 = vsyncpa [#allocation5], 1

</llo_original>
